<compile_context>
chip_gen: v5e
topology: v5e:2x2
jax: 0.10.0
libtpu: 0.0.40
codegen_flags: <defaults>
</compile_context>

<pallas_src>
import functools

import jax
import jax.numpy as jnp
from jax import lax
from jax.experimental import pallas as pl
from jax.experimental.pallas import tpu as pltpu

EPS = 1e-3


# ----------------------------- kernel helpers --------------------------------

def _shifted_taps(v, H, W, not_left, not_right, pad_val):
    """9 shifted (dy, dx) views of a flat (C, H*W) image with implicit spatial
    padding of 1 (value `pad_val`), in (dy*3 + dx) order."""
    C, HW = v.shape
    pad = jnp.full((C, W + 1), pad_val, v.dtype)
    vz = jnp.concatenate([pad, v, pad], axis=1)           # (C, HW + 2W + 2)
    taps = []
    for dy in range(3):
        for dx in range(3):
            s = (dy - 1) * W + (dx - 1)
            t = vz[:, (W + 1) + s:(W + 1) + s + HW]       # (C, HW)
            if dx == 0:                                   # reads column w-1
                t = jnp.where(not_left, t, pad_val)
            elif dx == 2:                                 # reads column w+1
                t = jnp.where(not_right, t, pad_val)
            taps.append(t)
    return taps


def _maxpool3x3_flat(x, H, W, not_left, not_right):
    """3x3 max-pool, stride 1, pad 1 (pad -inf), separable row/col passes.
    x: (C, H*W) float32."""
    C, HW = x.shape
    ninf = -jnp.inf
    pad1 = jnp.full((C, 1), ninf, x.dtype)
    xw = jnp.concatenate([pad1, x, pad1], axis=1)         # (C, HW + 2)
    left = jnp.where(not_left, xw[:, 0:HW], ninf)
    right = jnp.where(not_right, xw[:, 2:2 + HW], ninf)
    rmax = jnp.maximum(jnp.maximum(left, x), right)       # horizontal 3-max
    padw = jnp.full((C, W), ninf, x.dtype)
    xh = jnp.concatenate([padw, rmax, padw], axis=1)      # (C, HW + 2W)
    return jnp.maximum(jnp.maximum(xh[:, 0:HW], xh[:, W:W + HW]),
                       xh[:, 2 * W:2 * W + HW])           # vertical 3-max


# ------------------------------ fused kernel ----------------------------------

def _inception_kernel(x_ref,
                      w1_ref, s1_ref, b1_ref,
                      w2b_ref, s2b_ref, b2b_ref,
                      w3b_ref, s3b_ref, b3b_ref,
                      w3c_ref, s3c_ref, b3c_ref,
                      w4_ref, s4_ref, b4_ref,
                      o_ref, *, H, W, splits):
    out1, r3, r5 = splits
    HW = H * W
    x = x_ref[0]                                           # (Cin, HW) float32

    iota = lax.broadcasted_iota(jnp.int32, (1, HW), 1)
    col = (iota & (W - 1)) if (W & (W - 1)) == 0 else (iota % W)
    not_left = col >= 1                                    # source col w-1 valid
    not_right = col < (W - 1)                              # source col w+1 valid

    def bn_relu(z, s_ref, b_ref):                          # z: (C, HW) f32
        return jnp.maximum(z * s_ref[...] + b_ref[...], 0.0)

    # Fused 1x1 convs (branch1 | branch2-reduce | branch3-reduce): one GEMM.
    xb = x.astype(jnp.bfloat16)
    y123 = jnp.dot(w1_ref[...], xb, preferred_element_type=jnp.float32)
    y123 = bn_relu(y123, s1_ref, b1_ref)                   # (out1+r3+r5, HW)
    y1 = y123[0:out1]
    y2a = y123[out1:out1 + r3]
    y3a = y123[out1 + r3:out1 + r3 + r5]

    # 3x3 conv (stride 1, pad 1) + BN + ReLU as a single im2col GEMM.
    def conv3x3(v, w_ref, s_ref, b_ref):
        taps = _shifted_taps(v, H, W, not_left, not_right, 0.0)
        patches = jnp.concatenate(taps, axis=0)            # (9*C, HW)
        z = jnp.dot(w_ref[...], patches.astype(jnp.bfloat16),
                    preferred_element_type=jnp.float32)
        return bn_relu(z, s_ref, b_ref)

    y2 = conv3x3(y2a, w2b_ref, s2b_ref, b2b_ref)           # branch2: (o3, HW)
    y3 = conv3x3(y3a, w3b_ref, s3b_ref, b3b_ref)           # branch3 first 3x3
    y3 = conv3x3(y3, w3c_ref, s3c_ref, b3c_ref)            # branch3 second 3x3

    # Branch4: 3x3 max-pool then 1x1 conv.
    pooled = _maxpool3x3_flat(x, H, W, not_left, not_right)
    y4 = jnp.dot(w4_ref[...], pooled.astype(jnp.bfloat16),
                 preferred_element_type=jnp.float32)
    y4 = bn_relu(y4, s4_ref, b4_ref)                       # (opool, HW)

    # Channel concat; lane dim is H*W (>=128) so the store is lane-dense.
    o_ref[0] = jnp.concatenate([y1, y2, y3, y4], axis=0)


# ------------------------------ JAX wrapper -----------------------------------

def _fold_bn(bn):
    gamma, beta, mean, var = bn
    scale = (gamma / jnp.sqrt(var + EPS)).astype(jnp.float32)
    bias = (beta - mean * scale).astype(jnp.float32)
    return scale[:, None], bias[:, None]                   # (C, 1)


def inception_block(x_nchw, p):
    N, Cin, H, W = x_nchw.shape
    HW = H * W
    out1 = p["b1_w"].shape[1]
    r3 = p["b2a_w"].shape[1]
    o3 = p["b2b_w"].shape[3]
    r5 = p["b3a_w"].shape[1]
    o5 = p["b3b_w"].shape[3]
    opool = p["b4_w"].shape[1]
    ctot = out1 + o3 + o5 + opool

    x = x_nchw.reshape(N, Cin, HW).astype(jnp.float32)     # NCHW, spatial flat

    # Merge the three 1x1 convs that consume x (channels-first weights).
    w1 = jnp.concatenate([p["b1_w"].T, p["b2a_w"].T, p["b3a_w"].T],
                         axis=0).astype(jnp.bfloat16)       # (out1+r3+r5, Cin)
    s1a, b1a = _fold_bn(p["b1_bn"])
    s2a, b2a = _fold_bn(p["b2a_bn"])
    s3a, b3a = _fold_bn(p["b3a_bn"])
    s1 = jnp.concatenate([s1a, s2a, s3a], axis=0)
    b1 = jnp.concatenate([b1a, b2a, b3a], axis=0)

    def w3x3(w):   # (3, 3, Cin, Cout) HWIO -> (Cout, 9*Cin), K = (dy*3+dx)*Cin+c
        co = w.shape[3]
        return jnp.transpose(w, (3, 0, 1, 2)).reshape(co, -1).astype(jnp.bfloat16)

    w2b = w3x3(p["b2b_w"]); s2b, b2b = _fold_bn(p["b2b_bn"])
    w3b = w3x3(p["b3b_w"]); s3b, b3b = _fold_bn(p["b3b_bn"])
    w3c = w3x3(p["b3c_w"]); s3c, b3c = _fold_bn(p["b3c_bn"])
    w4 = p["b4_w"].T.astype(jnp.bfloat16)                   # (opool, Cin)
    s4, b4 = _fold_bn(p["b4_bn"])

    kernel = functools.partial(_inception_kernel, H=H, W=W,
                               splits=(out1, r3, r5))

    def full(a):   # whole (small) array resident for every grid step
        return pl.BlockSpec(a.shape, lambda n, nd=a.ndim: (0,) * nd)

    out = pl.pallas_call(
        kernel,
        out_shape=jax.ShapeDtypeStruct((N, ctot, HW), jnp.float32),
        grid=(N,),
        in_specs=[pl.BlockSpec((1, Cin, HW), lambda n: (n, 0, 0)),
                  full(w1), full(s1), full(b1),
                  full(w2b), full(s2b), full(b2b),
                  full(w3b), full(s3b), full(b3b),
                  full(w3c), full(s3c), full(b3c),
                  full(w4), full(s4), full(b4)],
        out_specs=pl.BlockSpec((1, ctot, HW), lambda n: (n, 0, 0)),
        compiler_params=pltpu.CompilerParams(
            dimension_semantics=("parallel",)),
    )(x, w1, s1, b1, w2b, s2b, b2b, w3b, s3b, b3b, w3c, s3c, b3c, w4, s4, b4)

    return out.reshape(N, ctot, H, W)                       # NCHW


# ------------------------- pure-JAX reference (check) -------------------------

def _ref_convblock(x, w_hwio, bn):
    y = lax.conv_general_dilated(
        x, w_hwio, window_strides=(1, 1),
        padding="SAME" if w_hwio.shape[0] == 3 else "VALID",
        dimension_numbers=("NHWC", "HWIO", "NHWC"))
    gamma, beta, mean, var = bn
    y = (y - mean) / jnp.sqrt(var + EPS) * gamma + beta
    return jnp.maximum(y, 0.0)


def inception_block_ref(x_nchw, p):
    x = jnp.transpose(x_nchw, (0, 2, 3, 1))
    y1 = _ref_convblock(x, p["b1_w"][None, None], p["b1_bn"])
    y2 = _ref_convblock(x, p["b2a_w"][None, None], p["b2a_bn"])
    y2 = _ref_convblock(y2, p["b2b_w"], p["b2b_bn"])
    y3 = _ref_convblock(x, p["b3a_w"][None, None], p["b3a_bn"])
    y3 = _ref_convblock(y3, p["b3b_w"], p["b3b_bn"])
    y3 = _ref_convblock(y3, p["b3c_w"], p["b3c_bn"])
    y4 = lax.reduce_window(x, -jnp.inf, lax.max, (1, 3, 3, 1), (1, 1, 1, 1),
                           [(0, 0), (1, 1), (1, 1), (0, 0)])
    y4 = _ref_convblock(y4, p["b4_w"][None, None], p["b4_bn"])
    y = jnp.concatenate([y1, y2, y3, y4], axis=-1)
    return jnp.transpose(y, (0, 3, 1, 2))


# --------------------------------- params -------------------------------------

def _bn_params(key, c):
    k1, k2, k3, k4 = jax.random.split(key, 4)
    gamma = 1.0 + 0.2 * jax.random.normal(k1, (c,), jnp.float32)
    beta = 0.1 * jax.random.normal(k2, (c,), jnp.float32)
    mean = 0.1 * jax.random.normal(k3, (c,), jnp.float32)
    var = 0.5 + jax.random.uniform(k4, (c,), jnp.float32)
    return (gamma, beta, mean, var)


def init_params(key, cin, out1, r3, o3, r5, o5, opool):
    ks = jax.random.split(key, 14)
    s = 0.1
    return {
        "b1_w": s * jax.random.normal(ks[0], (cin, out1), jnp.float32),
        "b1_bn": _bn_params(ks[1], out1),
        "b2a_w": s * jax.random.normal(ks[2], (cin, r3), jnp.float32),
        "b2a_bn": _bn_params(ks[3], r3),
        "b2b_w": s * jax.random.normal(ks[4], (3, 3, r3, o3), jnp.float32),
        "b2b_bn": _bn_params(ks[5], o3),
        "b3a_w": s * jax.random.normal(ks[6], (cin, r5), jnp.float32),
        "b3a_bn": _bn_params(ks[7], r5),
        "b3b_w": s * jax.random.normal(ks[8], (3, 3, r5, o5), jnp.float32),
        "b3b_bn": _bn_params(ks[9], o5),
        "b3c_w": s * jax.random.normal(ks[10], (3, 3, o5, o5), jnp.float32),
        "b3c_bn": _bn_params(ks[11], o5),
        "b4_w": s * jax.random.normal(ks[12], (cin, opool), jnp.float32),
        "b4_bn": _bn_params(ks[13], opool),
    }


if __name__ == "__main__":
    key = jax.random.PRNGKey(0)
    kx, kp = jax.random.split(key)

    N, Cin, H, W = 2, 4, 16, 16
    out_1x1, r3, o3, r5, o5, out_pool = 4, 4, 8, 4, 4, 4

    x = jax.random.normal(kx, (N, Cin, H, W), jnp.float32)  # NCHW like PyTorch
    params = init_params(kp, Cin, out_1x1, r3, o3, r5, o5, out_pool)

    out = jax.block_until_ready(jax.jit(inception_block)(x, params))

    expected_c = out_1x1 + o3 + o5 + out_pool
    assert out.shape == (N, expected_c, H, W), out.shape

    ref = jax.block_until_ready(inception_block_ref(x, params))
    # bf16 MXU inputs (f32 accumulation) -> slightly looser tolerance than f32.
    if not jnp.allclose(out, ref, atol=5e-2, rtol=5e-2):
        err = float(jnp.max(jnp.abs(out - ref)))
        raise AssertionError(f"Pallas output mismatch vs JAX reference (max abs err {err})")

    print("KERNEL_OK")
</pallas_src>

<mosaic_0001>
module attributes {stable_mosaic.version = 11 : i64} {
  func.func @_inception_kernel(%arg0: i32, %arg1: memref<1x4x256xf32, #tpu.memory_space<vmem>>, %arg2: memref<12x4xbf16, #tpu.memory_space<vmem>>, %arg3: memref<12x1xf32, #tpu.memory_space<vmem>>, %arg4: memref<12x1xf32, #tpu.memory_space<vmem>>, %arg5: memref<8x36xbf16, #tpu.memory_space<vmem>>, %arg6: memref<8x1xf32, #tpu.memory_space<vmem>>, %arg7: memref<8x1xf32, #tpu.memory_space<vmem>>, %arg8: memref<4x36xbf16, #tpu.memory_space<vmem>>, %arg9: memref<4x1xf32, #tpu.memory_space<vmem>>, %arg10: memref<4x1xf32, #tpu.memory_space<vmem>>, %arg11: memref<4x36xbf16, #tpu.memory_space<vmem>>, %arg12: memref<4x1xf32, #tpu.memory_space<vmem>>, %arg13: memref<4x1xf32, #tpu.memory_space<vmem>>, %arg14: memref<4x4xbf16, #tpu.memory_space<vmem>>, %arg15: memref<4x1xf32, #tpu.memory_space<vmem>>, %arg16: memref<4x1xf32, #tpu.memory_space<vmem>>, %arg17: memref<1x20x256xf32, #tpu.memory_space<vmem>>) attributes {dimension_semantics = [#tpu.dimension_semantics<parallel>], iteration_bounds = array<i64: 2>, scalar_prefetch = 0 : i64, scratch_operands = 0 : i64, tpu.core_type = #tpu.core_type<tc>, window_params = [{transform_indices = @transform_0, window_bounds = array<i64: 1, 4, 256>}, {pipeline_mode = #tpu.pipeline_mode<synchronous>, transform_indices = @transform_1, window_bounds = array<i64: 12, 4>}, {pipeline_mode = #tpu.pipeline_mode<synchronous>, transform_indices = @transform_2, window_bounds = array<i64: 12, 1>}, {pipeline_mode = #tpu.pipeline_mode<synchronous>, transform_indices = @transform_3, window_bounds = array<i64: 12, 1>}, {pipeline_mode = #tpu.pipeline_mode<synchronous>, transform_indices = @transform_4, window_bounds = array<i64: 8, 36>}, {pipeline_mode = #tpu.pipeline_mode<synchronous>, transform_indices = @transform_5, window_bounds = array<i64: 8, 1>}, {pipeline_mode = #tpu.pipeline_mode<synchronous>, transform_indices = @transform_6, window_bounds = array<i64: 8, 1>}, {pipeline_mode = #tpu.pipeline_mode<synchronous>, transform_indices = @transform_7, window_bounds = array<i64: 4, 36>}, {pipeline_mode = #tpu.pipeline_mode<synchronous>, transform_indices = @transform_8, window_bounds = array<i64: 4, 1>}, {pipeline_mode = #tpu.pipeline_mode<synchronous>, transform_indices = @transform_9, window_bounds = array<i64: 4, 1>}, {pipeline_mode = #tpu.pipeline_mode<synchronous>, transform_indices = @transform_10, window_bounds = array<i64: 4, 36>}, {pipeline_mode = #tpu.pipeline_mode<synchronous>, transform_indices = @transform_11, window_bounds = array<i64: 4, 1>}, {pipeline_mode = #tpu.pipeline_mode<synchronous>, transform_indices = @transform_12, window_bounds = array<i64: 4, 1>}, {pipeline_mode = #tpu.pipeline_mode<synchronous>, transform_indices = @transform_13, window_bounds = array<i64: 4, 4>}, {pipeline_mode = #tpu.pipeline_mode<synchronous>, transform_indices = @transform_14, window_bounds = array<i64: 4, 1>}, {pipeline_mode = #tpu.pipeline_mode<synchronous>, transform_indices = @transform_15, window_bounds = array<i64: 4, 1>}, {transform_indices = @transform_16, window_bounds = array<i64: 1, 20, 256>}]} {
    %c0 = arith.constant 0 : index
    %c0_0 = arith.constant 0 : index
    %c0_1 = arith.constant 0 : index
    %0 = vector.load %arg1[%c0, %c0_0, %c0_1] : memref<1x4x256xf32, #tpu.memory_space<vmem>>, vector<1x4x256xf32>
    %1 = vector.shape_cast %0 : vector<1x4x256xf32> to vector<4x256xf32>
    %2 = tpu.iota {dimensions = array<i32: 1>} : vector<1x256xi32>
    %c15_i32 = arith.constant 15 : i32
    %3 = vector.broadcast %c15_i32 : i32 to vector<1x256xi32>
    %4 = arith.andi %2, %3 : vector<1x256xi32>
    %c1_i32 = arith.constant 1 : i32
    %5 = vector.broadcast %c1_i32 : i32 to vector<1x256xi32>
    %6 = arith.cmpi sge, %4, %5 : vector<1x256xi32>
    %c15_i32_2 = arith.constant 15 : i32
    %7 = vector.broadcast %c15_i32_2 : i32 to vector<1x256xi32>
    %8 = arith.cmpi slt, %4, %7 : vector<1x256xi32>
    %9 = arith.truncf %1 : vector<4x256xf32> to vector<4x256xbf16>
    %c0_3 = arith.constant 0 : index
    %c0_4 = arith.constant 0 : index
    %10 = vector.load %arg2[%c0_3, %c0_4] : memref<12x4xbf16, #tpu.memory_space<vmem>>, vector<12x4xbf16>
    %cst = arith.constant dense<0.000000e+00> : vector<12x256xf32>
    %11 = tpu.matmul %10, %9, %cst {dimension_numbers = #tpu.dot_dimension_numbers<[1], [0], [0], [1], [0, 0, 1, 1], [], []>} : vector<12x4xbf16>, vector<4x256xbf16>, vector<12x256xf32> -> vector<12x256xf32>
    %c0_5 = arith.constant 0 : index
    %c0_6 = arith.constant 0 : index
    %12 = vector.load %arg3[%c0_5, %c0_6] : memref<12x1xf32, #tpu.memory_space<vmem>>, vector<12x1xf32>
    %13 = vector.broadcast %12 : vector<12x1xf32> to vector<12x256xf32>
    %14 = arith.mulf %11, %13 : vector<12x256xf32>
    %c0_7 = arith.constant 0 : index
    %c0_8 = arith.constant 0 : index
    %15 = vector.load %arg4[%c0_7, %c0_8] : memref<12x1xf32, #tpu.memory_space<vmem>>, vector<12x1xf32>
    %16 = vector.broadcast %15 : vector<12x1xf32> to vector<12x256xf32>
    %17 = arith.addf %14, %16 : vector<12x256xf32>
    %cst_9 = arith.constant 0.000000e+00 : f32
    %18 = vector.broadcast %cst_9 : f32 to vector<12x256xf32>
    %19 = arith.maximumf %17, %18 : vector<12x256xf32>
    %20 = vector.extract_strided_slice %19 {offsets = [0, 0], sizes = [4, 256], strides = [1, 1]} : vector<12x256xf32> to vector<4x256xf32>
    %21 = vector.extract_strided_slice %19 {offsets = [4, 0], sizes = [4, 256], strides = [1, 1]} : vector<12x256xf32> to vector<4x256xf32>
    %22 = vector.extract_strided_slice %19 {offsets = [8, 0], sizes = [4, 256], strides = [1, 1]} : vector<12x256xf32> to vector<4x256xf32>
    %cst_10 = arith.constant 0.000000e+00 : f32
    %23 = vector.broadcast %cst_10 : f32 to vector<4x17xf32>
    %24 = tpu.concatenate %23, %21, %23 in 1 : vector<4x17xf32>, vector<4x256xf32>, vector<4x17xf32> -> vector<4x290xf32>
    %25 = vector.extract_strided_slice %24 {offsets = [0, 0], sizes = [4, 256], strides = [1, 1]} : vector<4x290xf32> to vector<4x256xf32>
    %cst_11 = arith.constant 0.000000e+00 : f32
    %26 = vector.shape_cast %6 : vector<1x256xi1> to vector<1x256xi1>
    %27 = vector.broadcast %26 : vector<1x256xi1> to vector<4x256xi1>
    %28 = vector.broadcast %cst_11 : f32 to vector<4x256xf32>
    %29 = arith.select %27, %25, %28 : vector<4x256xi1>, vector<4x256xf32>
    %30 = vector.extract_strided_slice %24 {offsets = [0, 1], sizes = [4, 256], strides = [1, 1]} : vector<4x290xf32> to vector<4x256xf32>
    %31 = vector.extract_strided_slice %24 {offsets = [0, 2], sizes = [4, 256], strides = [1, 1]} : vector<4x290xf32> to vector<4x256xf32>
    %cst_12 = arith.constant 0.000000e+00 : f32
    %32 = vector.shape_cast %8 : vector<1x256xi1> to vector<1x256xi1>
    %33 = vector.broadcast %32 : vector<1x256xi1> to vector<4x256xi1>
    %34 = vector.broadcast %cst_12 : f32 to vector<4x256xf32>
    %35 = arith.select %33, %31, %34 : vector<4x256xi1>, vector<4x256xf32>
    %36 = vector.extract_strided_slice %24 {offsets = [0, 16], sizes = [4, 256], strides = [1, 1]} : vector<4x290xf32> to vector<4x256xf32>
    %cst_13 = arith.constant 0.000000e+00 : f32
    %37 = vector.shape_cast %6 : vector<1x256xi1> to vector<1x256xi1>
    %38 = vector.broadcast %37 : vector<1x256xi1> to vector<4x256xi1>
    %39 = vector.broadcast %cst_13 : f32 to vector<4x256xf32>
    %40 = arith.select %38, %36, %39 : vector<4x256xi1>, vector<4x256xf32>
    %41 = vector.extract_strided_slice %24 {offsets = [0, 17], sizes = [4, 256], strides = [1, 1]} : vector<4x290xf32> to vector<4x256xf32>
    %42 = vector.extract_strided_slice %24 {offsets = [0, 18], sizes = [4, 256], strides = [1, 1]} : vector<4x290xf32> to vector<4x256xf32>
    %cst_14 = arith.constant 0.000000e+00 : f32
    %43 = vector.shape_cast %8 : vector<1x256xi1> to vector<1x256xi1>
    %44 = vector.broadcast %43 : vector<1x256xi1> to vector<4x256xi1>
    %45 = vector.broadcast %cst_14 : f32 to vector<4x256xf32>
    %46 = arith.select %44, %42, %45 : vector<4x256xi1>, vector<4x256xf32>
    %47 = vector.extract_strided_slice %24 {offsets = [0, 32], sizes = [4, 256], strides = [1, 1]} : vector<4x290xf32> to vector<4x256xf32>
    %cst_15 = arith.constant 0.000000e+00 : f32
    %48 = vector.shape_cast %6 : vector<1x256xi1> to vector<1x256xi1>
    %49 = vector.broadcast %48 : vector<1x256xi1> to vector<4x256xi1>
    %50 = vector.broadcast %cst_15 : f32 to vector<4x256xf32>
    %51 = arith.select %49, %47, %50 : vector<4x256xi1>, vector<4x256xf32>
    %52 = vector.extract_strided_slice %24 {offsets = [0, 33], sizes = [4, 256], strides = [1, 1]} : vector<4x290xf32> to vector<4x256xf32>
    %53 = vector.extract_strided_slice %24 {offsets = [0, 34], sizes = [4, 256], strides = [1, 1]} : vector<4x290xf32> to vector<4x256xf32>
    %cst_16 = arith.constant 0.000000e+00 : f32
    %54 = vector.shape_cast %8 : vector<1x256xi1> to vector<1x256xi1>
    %55 = vector.broadcast %54 : vector<1x256xi1> to vector<4x256xi1>
    %56 = vector.broadcast %cst_16 : f32 to vector<4x256xf32>
    %57 = arith.select %55, %53, %56 : vector<4x256xi1>, vector<4x256xf32>
    %58 = tpu.concatenate %29, %30, %35, %40, %41, %46, %51, %52, %57 in 0 : vector<4x256xf32>, vector<4x256xf32>, vector<4x256xf32>, vector<4x256xf32>, vector<4x256xf32>, vector<4x256xf32>, vector<4x256xf32>, vector<4x256xf32>, vector<4x256xf32> -> vector<36x256xf32>
    %c0_17 = arith.constant 0 : index
    %c0_18 = arith.constant 0 : index
    %59 = vector.load %arg5[%c0_17, %c0_18] : memref<8x36xbf16, #tpu.memory_space<vmem>>, vector<8x36xbf16>
    %60 = arith.truncf %58 : vector<36x256xf32> to vector<36x256xbf16>
    %cst_19 = arith.constant dense<0.000000e+00> : vector<8x256xf32>
    %61 = tpu.matmul %59, %60, %cst_19 {dimension_numbers = #tpu.dot_dimension_numbers<[1], [0], [0], [1], [0, 0, 1, 1], [], []>} : vector<8x36xbf16>, vector<36x256xbf16>, vector<8x256xf32> -> vector<8x256xf32>
    %c0_20 = arith.constant 0 : index
    %c0_21 = arith.constant 0 : index
    %62 = vector.load %arg6[%c0_20, %c0_21] : memref<8x1xf32, #tpu.memory_space<vmem>>, vector<8x1xf32>
    %63 = vector.broadcast %62 : vector<8x1xf32> to vector<8x256xf32>
    %64 = arith.mulf %61, %63 : vector<8x256xf32>
    %c0_22 = arith.constant 0 : index
    %c0_23 = arith.constant 0 : index
    %65 = vector.load %arg7[%c0_22, %c0_23] : memref<8x1xf32, #tpu.memory_space<vmem>>, vector<8x1xf32>
    %66 = vector.broadcast %65 : vector<8x1xf32> to vector<8x256xf32>
    %67 = arith.addf %64, %66 : vector<8x256xf32>
    %cst_24 = arith.constant 0.000000e+00 : f32
    %68 = vector.broadcast %cst_24 : f32 to vector<8x256xf32>
    %69 = arith.maximumf %67, %68 : vector<8x256xf32>
    %cst_25 = arith.constant 0.000000e+00 : f32
    %70 = vector.broadcast %cst_25 : f32 to vector<4x17xf32>
    %71 = tpu.concatenate %70, %22, %70 in 1 : vector<4x17xf32>, vector<4x256xf32>, vector<4x17xf32> -> vector<4x290xf32>
    %72 = vector.extract_strided_slice %71 {offsets = [0, 0], sizes = [4, 256], strides = [1, 1]} : vector<4x290xf32> to vector<4x256xf32>
    %cst_26 = arith.constant 0.000000e+00 : f32
    %73 = vector.shape_cast %6 : vector<1x256xi1> to vector<1x256xi1>
    %74 = vector.broadcast %73 : vector<1x256xi1> to vector<4x256xi1>
    %75 = vector.broadcast %cst_26 : f32 to vector<4x256xf32>
    %76 = arith.select %74, %72, %75 : vector<4x256xi1>, vector<4x256xf32>
    %77 = vector.extract_strided_slice %71 {offsets = [0, 1], sizes = [4, 256], strides = [1, 1]} : vector<4x290xf32> to vector<4x256xf32>
    %78 = vector.extract_strided_slice %71 {offsets = [0, 2], sizes = [4, 256], strides = [1, 1]} : vector<4x290xf32> to vector<4x256xf32>
    %cst_27 = arith.constant 0.000000e+00 : f32
    %79 = vector.shape_cast %8 : vector<1x256xi1> to vector<1x256xi1>
    %80 = vector.broadcast %79 : vector<1x256xi1> to vector<4x256xi1>
    %81 = vector.broadcast %cst_27 : f32 to vector<4x256xf32>
    %82 = arith.select %80, %78, %81 : vector<4x256xi1>, vector<4x256xf32>
    %83 = vector.extract_strided_slice %71 {offsets = [0, 16], sizes = [4, 256], strides = [1, 1]} : vector<4x290xf32> to vector<4x256xf32>
    %cst_28 = arith.constant 0.000000e+00 : f32
    %84 = vector.shape_cast %6 : vector<1x256xi1> to vector<1x256xi1>
    %85 = vector.broadcast %84 : vector<1x256xi1> to vector<4x256xi1>
    %86 = vector.broadcast %cst_28 : f32 to vector<4x256xf32>
    %87 = arith.select %85, %83, %86 : vector<4x256xi1>, vector<4x256xf32>
    %88 = vector.extract_strided_slice %71 {offsets = [0, 17], sizes = [4, 256], strides = [1, 1]} : vector<4x290xf32> to vector<4x256xf32>
    %89 = vector.extract_strided_slice %71 {offsets = [0, 18], sizes = [4, 256], strides = [1, 1]} : vector<4x290xf32> to vector<4x256xf32>
    %cst_29 = arith.constant 0.000000e+00 : f32
    %90 = vector.shape_cast %8 : vector<1x256xi1> to vector<1x256xi1>
    %91 = vector.broadcast %90 : vector<1x256xi1> to vector<4x256xi1>
    %92 = vector.broadcast %cst_29 : f32 to vector<4x256xf32>
    %93 = arith.select %91, %89, %92 : vector<4x256xi1>, vector<4x256xf32>
    %94 = vector.extract_strided_slice %71 {offsets = [0, 32], sizes = [4, 256], strides = [1, 1]} : vector<4x290xf32> to vector<4x256xf32>
    %cst_30 = arith.constant 0.000000e+00 : f32
    %95 = vector.shape_cast %6 : vector<1x256xi1> to vector<1x256xi1>
    %96 = vector.broadcast %95 : vector<1x256xi1> to vector<4x256xi1>
    %97 = vector.broadcast %cst_30 : f32 to vector<4x256xf32>
    %98 = arith.select %96, %94, %97 : vector<4x256xi1>, vector<4x256xf32>
    %99 = vector.extract_strided_slice %71 {offsets = [0, 33], sizes = [4, 256], strides = [1, 1]} : vector<4x290xf32> to vector<4x256xf32>
    %100 = vector.extract_strided_slice %71 {offsets = [0, 34], sizes = [4, 256], strides = [1, 1]} : vector<4x290xf32> to vector<4x256xf32>
    %cst_31 = arith.constant 0.000000e+00 : f32
    %101 = vector.shape_cast %8 : vector<1x256xi1> to vector<1x256xi1>
    %102 = vector.broadcast %101 : vector<1x256xi1> to vector<4x256xi1>
    %103 = vector.broadcast %cst_31 : f32 to vector<4x256xf32>
    %104 = arith.select %102, %100, %103 : vector<4x256xi1>, vector<4x256xf32>
    %105 = tpu.concatenate %76, %77, %82, %87, %88, %93, %98, %99, %104 in 0 : vector<4x256xf32>, vector<4x256xf32>, vector<4x256xf32>, vector<4x256xf32>, vector<4x256xf32>, vector<4x256xf32>, vector<4x256xf32>, vector<4x256xf32>, vector<4x256xf32> -> vector<36x256xf32>
    %c0_32 = arith.constant 0 : index
    %c0_33 = arith.constant 0 : index
    %106 = vector.load %arg8[%c0_32, %c0_33] : memref<4x36xbf16, #tpu.memory_space<vmem>>, vector<4x36xbf16>
    %107 = arith.truncf %105 : vector<36x256xf32> to vector<36x256xbf16>
    %cst_34 = arith.constant dense<0.000000e+00> : vector<4x256xf32>
    %108 = tpu.matmul %106, %107, %cst_34 {dimension_numbers = #tpu.dot_dimension_numbers<[1], [0], [0], [1], [0, 0, 1, 1], [], []>} : vector<4x36xbf16>, vector<36x256xbf16>, vector<4x256xf32> -> vector<4x256xf32>
    %c0_35 = arith.constant 0 : index
    %c0_36 = arith.constant 0 : index
    %109 = vector.load %arg9[%c0_35, %c0_36] : memref<4x1xf32, #tpu.memory_space<vmem>>, vector<4x1xf32>
    %110 = vector.broadcast %109 : vector<4x1xf32> to vector<4x256xf32>
    %111 = arith.mulf %108, %110 : vector<4x256xf32>
    %c0_37 = arith.constant 0 : index
    %c0_38 = arith.constant 0 : index
    %112 = vector.load %arg10[%c0_37, %c0_38] : memref<4x1xf32, #tpu.memory_space<vmem>>, vector<4x1xf32>
    %113 = vector.broadcast %112 : vector<4x1xf32> to vector<4x256xf32>
    %114 = arith.addf %111, %113 : vector<4x256xf32>
    %cst_39 = arith.constant 0.000000e+00 : f32
    %115 = vector.broadcast %cst_39 : f32 to vector<4x256xf32>
    %116 = arith.maximumf %114, %115 : vector<4x256xf32>
    %cst_40 = arith.constant 0.000000e+00 : f32
    %117 = vector.broadcast %cst_40 : f32 to vector<4x17xf32>
    %118 = tpu.concatenate %117, %116, %117 in 1 : vector<4x17xf32>, vector<4x256xf32>, vector<4x17xf32> -> vector<4x290xf32>
    %119 = vector.extract_strided_slice %118 {offsets = [0, 0], sizes = [4, 256], strides = [1, 1]} : vector<4x290xf32> to vector<4x256xf32>
    %cst_41 = arith.constant 0.000000e+00 : f32
    %120 = vector.shape_cast %6 : vector<1x256xi1> to vector<1x256xi1>
    %121 = vector.broadcast %120 : vector<1x256xi1> to vector<4x256xi1>
    %122 = vector.broadcast %cst_41 : f32 to vector<4x256xf32>
    %123 = arith.select %121, %119, %122 : vector<4x256xi1>, vector<4x256xf32>
    %124 = vector.extract_strided_slice %118 {offsets = [0, 1], sizes = [4, 256], strides = [1, 1]} : vector<4x290xf32> to vector<4x256xf32>
    %125 = vector.extract_strided_slice %118 {offsets = [0, 2], sizes = [4, 256], strides = [1, 1]} : vector<4x290xf32> to vector<4x256xf32>
    %cst_42 = arith.constant 0.000000e+00 : f32
    %126 = vector.shape_cast %8 : vector<1x256xi1> to vector<1x256xi1>
    %127 = vector.broadcast %126 : vector<1x256xi1> to vector<4x256xi1>
    %128 = vector.broadcast %cst_42 : f32 to vector<4x256xf32>
    %129 = arith.select %127, %125, %128 : vector<4x256xi1>, vector<4x256xf32>
    %130 = vector.extract_strided_slice %118 {offsets = [0, 16], sizes = [4, 256], strides = [1, 1]} : vector<4x290xf32> to vector<4x256xf32>
    %cst_43 = arith.constant 0.000000e+00 : f32
    %131 = vector.shape_cast %6 : vector<1x256xi1> to vector<1x256xi1>
    %132 = vector.broadcast %131 : vector<1x256xi1> to vector<4x256xi1>
    %133 = vector.broadcast %cst_43 : f32 to vector<4x256xf32>
    %134 = arith.select %132, %130, %133 : vector<4x256xi1>, vector<4x256xf32>
    %135 = vector.extract_strided_slice %118 {offsets = [0, 17], sizes = [4, 256], strides = [1, 1]} : vector<4x290xf32> to vector<4x256xf32>
    %136 = vector.extract_strided_slice %118 {offsets = [0, 18], sizes = [4, 256], strides = [1, 1]} : vector<4x290xf32> to vector<4x256xf32>
    %cst_44 = arith.constant 0.000000e+00 : f32
    %137 = vector.shape_cast %8 : vector<1x256xi1> to vector<1x256xi1>
    %138 = vector.broadcast %137 : vector<1x256xi1> to vector<4x256xi1>
    %139 = vector.broadcast %cst_44 : f32 to vector<4x256xf32>
    %140 = arith.select %138, %136, %139 : vector<4x256xi1>, vector<4x256xf32>
    %141 = vector.extract_strided_slice %118 {offsets = [0, 32], sizes = [4, 256], strides = [1, 1]} : vector<4x290xf32> to vector<4x256xf32>
    %cst_45 = arith.constant 0.000000e+00 : f32
    %142 = vector.shape_cast %6 : vector<1x256xi1> to vector<1x256xi1>
    %143 = vector.broadcast %142 : vector<1x256xi1> to vector<4x256xi1>
    %144 = vector.broadcast %cst_45 : f32 to vector<4x256xf32>
    %145 = arith.select %143, %141, %144 : vector<4x256xi1>, vector<4x256xf32>
    %146 = vector.extract_strided_slice %118 {offsets = [0, 33], sizes = [4, 256], strides = [1, 1]} : vector<4x290xf32> to vector<4x256xf32>
    %147 = vector.extract_strided_slice %118 {offsets = [0, 34], sizes = [4, 256], strides = [1, 1]} : vector<4x290xf32> to vector<4x256xf32>
    %cst_46 = arith.constant 0.000000e+00 : f32
    %148 = vector.shape_cast %8 : vector<1x256xi1> to vector<1x256xi1>
    %149 = vector.broadcast %148 : vector<1x256xi1> to vector<4x256xi1>
    %150 = vector.broadcast %cst_46 : f32 to vector<4x256xf32>
    %151 = arith.select %149, %147, %150 : vector<4x256xi1>, vector<4x256xf32>
    %152 = tpu.concatenate %123, %124, %129, %134, %135, %140, %145, %146, %151 in 0 : vector<4x256xf32>, vector<4x256xf32>, vector<4x256xf32>, vector<4x256xf32>, vector<4x256xf32>, vector<4x256xf32>, vector<4x256xf32>, vector<4x256xf32>, vector<4x256xf32> -> vector<36x256xf32>
    %c0_47 = arith.constant 0 : index
    %c0_48 = arith.constant 0 : index
    %153 = vector.load %arg11[%c0_47, %c0_48] : memref<4x36xbf16, #tpu.memory_space<vmem>>, vector<4x36xbf16>
    %154 = arith.truncf %152 : vector<36x256xf32> to vector<36x256xbf16>
    %cst_49 = arith.constant dense<0.000000e+00> : vector<4x256xf32>
    %155 = tpu.matmul %153, %154, %cst_49 {dimension_numbers = #tpu.dot_dimension_numbers<[1], [0], [0], [1], [0, 0, 1, 1], [], []>} : vector<4x36xbf16>, vector<36x256xbf16>, vector<4x256xf32> -> vector<4x256xf32>
    %c0_50 = arith.constant 0 : index
    %c0_51 = arith.constant 0 : index
    %156 = vector.load %arg12[%c0_50, %c0_51] : memref<4x1xf32, #tpu.memory_space<vmem>>, vector<4x1xf32>
    %157 = vector.broadcast %156 : vector<4x1xf32> to vector<4x256xf32>
    %158 = arith.mulf %155, %157 : vector<4x256xf32>
    %c0_52 = arith.constant 0 : index
    %c0_53 = arith.constant 0 : index
    %159 = vector.load %arg13[%c0_52, %c0_53] : memref<4x1xf32, #tpu.memory_space<vmem>>, vector<4x1xf32>
    %160 = vector.broadcast %159 : vector<4x1xf32> to vector<4x256xf32>
    %161 = arith.addf %158, %160 : vector<4x256xf32>
    %cst_54 = arith.constant 0.000000e+00 : f32
    %162 = vector.broadcast %cst_54 : f32 to vector<4x256xf32>
    %163 = arith.maximumf %161, %162 : vector<4x256xf32>
    %cst_55 = arith.constant 0xFF800000 : f32
    %164 = vector.broadcast %cst_55 : f32 to vector<4x1xf32>
    %165 = tpu.concatenate %164, %1, %164 in 1 : vector<4x1xf32>, vector<4x256xf32>, vector<4x1xf32> -> vector<4x258xf32>
    %166 = vector.extract_strided_slice %165 {offsets = [0, 0], sizes = [4, 256], strides = [1, 1]} : vector<4x258xf32> to vector<4x256xf32>
    %cst_56 = arith.constant 0xFF800000 : f32
    %167 = vector.shape_cast %6 : vector<1x256xi1> to vector<1x256xi1>
    %168 = vector.broadcast %167 : vector<1x256xi1> to vector<4x256xi1>
    %169 = vector.broadcast %cst_56 : f32 to vector<4x256xf32>
    %170 = arith.select %168, %166, %169 : vector<4x256xi1>, vector<4x256xf32>
    %171 = vector.extract_strided_slice %165 {offsets = [0, 2], sizes = [4, 256], strides = [1, 1]} : vector<4x258xf32> to vector<4x256xf32>
    %cst_57 = arith.constant 0xFF800000 : f32
    %172 = vector.shape_cast %8 : vector<1x256xi1> to vector<1x256xi1>
    %173 = vector.broadcast %172 : vector<1x256xi1> to vector<4x256xi1>
    %174 = vector.broadcast %cst_57 : f32 to vector<4x256xf32>
    %175 = arith.select %173, %171, %174 : vector<4x256xi1>, vector<4x256xf32>
    %176 = arith.maximumf %170, %1 : vector<4x256xf32>
    %177 = arith.maximumf %176, %175 : vector<4x256xf32>
    %cst_58 = arith.constant 0xFF800000 : f32
    %178 = vector.broadcast %cst_58 : f32 to vector<4x16xf32>
    %179 = tpu.concatenate %178, %177, %178 in 1 : vector<4x16xf32>, vector<4x256xf32>, vector<4x16xf32> -> vector<4x288xf32>
    %180 = vector.extract_strided_slice %179 {offsets = [0, 0], sizes = [4, 256], strides = [1, 1]} : vector<4x288xf32> to vector<4x256xf32>
    %181 = vector.extract_strided_slice %179 {offsets = [0, 16], sizes = [4, 256], strides = [1, 1]} : vector<4x288xf32> to vector<4x256xf32>
    %182 = arith.maximumf %180, %181 : vector<4x256xf32>
    %183 = vector.extract_strided_slice %179 {offsets = [0, 32], sizes = [4, 256], strides = [1, 1]} : vector<4x288xf32> to vector<4x256xf32>
    %184 = arith.maximumf %182, %183 : vector<4x256xf32>
    %c0_59 = arith.constant 0 : index
    %c0_60 = arith.constant 0 : index
    %185 = vector.load %arg14[%c0_59, %c0_60] : memref<4x4xbf16, #tpu.memory_space<vmem>>, vector<4x4xbf16>
    %186 = arith.truncf %184 : vector<4x256xf32> to vector<4x256xbf16>
    %cst_61 = arith.constant dense<0.000000e+00> : vector<4x256xf32>
    %187 = tpu.matmul %185, %186, %cst_61 {dimension_numbers = #tpu.dot_dimension_numbers<[1], [0], [0], [1], [0, 0, 1, 1], [], []>} : vector<4x4xbf16>, vector<4x256xbf16>, vector<4x256xf32> -> vector<4x256xf32>
    %c0_62 = arith.constant 0 : index
    %c0_63 = arith.constant 0 : index
    %188 = vector.load %arg15[%c0_62, %c0_63] : memref<4x1xf32, #tpu.memory_space<vmem>>, vector<4x1xf32>
    %189 = vector.broadcast %188 : vector<4x1xf32> to vector<4x256xf32>
    %190 = arith.mulf %187, %189 : vector<4x256xf32>
    %c0_64 = arith.constant 0 : index
    %c0_65 = arith.constant 0 : index
    %191 = vector.load %arg16[%c0_64, %c0_65] : memref<4x1xf32, #tpu.memory_space<vmem>>, vector<4x1xf32>
    %192 = vector.broadcast %191 : vector<4x1xf32> to vector<4x256xf32>
    %193 = arith.addf %190, %192 : vector<4x256xf32>
    %cst_66 = arith.constant 0.000000e+00 : f32
    %194 = vector.broadcast %cst_66 : f32 to vector<4x256xf32>
    %195 = arith.maximumf %193, %194 : vector<4x256xf32>
    %196 = tpu.concatenate %20, %69, %163, %195 in 0 : vector<4x256xf32>, vector<8x256xf32>, vector<4x256xf32>, vector<4x256xf32> -> vector<20x256xf32>
    %c0_67 = arith.constant 0 : index
    %c0_68 = arith.constant 0 : index
    %c0_69 = arith.constant 0 : index
    %197 = vector.load %arg17[%c0_67, %c0_68, %c0_69] : memref<1x20x256xf32, #tpu.memory_space<vmem>>, vector<1x20x256xf32>
    %198 = vector.shape_cast %197 : vector<1x20x256xf32> to vector<20x256xf32>
    %199 = vector.shape_cast %196 : vector<20x256xf32> to vector<1x20x256xf32>
    tpu.vector_store %arg17[%c0_67, %c0_68, %c0_69], %199 {strides = array<i32>} : memref<1x20x256xf32, #tpu.memory_space<vmem>>, vector<1x20x256xf32>,
    return
  }
  func.func @transform_0(%arg0: i32) -> (i32, i32, i32) {
    %c0_i32 = arith.constant 0 : i32
    %c0_i32_0 = arith.constant 0 : i32
    %c0_i32_1 = arith.constant 0 : i32
    return %arg0, %c0_i32, %c0_i32_0 : i32, i32, i32
  }
  func.func @transform_1(%arg0: i32) -> (i32, i32) {
    %c0_i32 = arith.constant 0 : i32
    %c0_i32_0 = arith.constant 0 : i32
    %c0_i32_1 = arith.constant 0 : i32
    return %c0_i32, %c0_i32_0 : i32, i32
  }
  func.func @transform_2(%arg0: i32) -> (i32, i32) {
    %c0_i32 = arith.constant 0 : i32
    %c0_i32_0 = arith.constant 0 : i32
    %c0_i32_1 = arith.constant 0 : i32
    return %c0_i32, %c0_i32_0 : i32, i32
  }
  func.func @transform_3(%arg0: i32) -> (i32, i32) {
    %c0_i32 = arith.constant 0 : i32
    %c0_i32_0 = arith.constant 0 : i32
    %c0_i32_1 = arith.constant 0 : i32
    return %c0_i32, %c0_i32_0 : i32, i32
  }
  func.func @transform_4(%arg0: i32) -> (i32, i32) {
    %c0_i32 = arith.constant 0 : i32
    %c0_i32_0 = arith.constant 0 : i32
    %c0_i32_1 = arith.constant 0 : i32
    return %c0_i32, %c0_i32_0 : i32, i32
  }
  func.func @transform_5(%arg0: i32) -> (i32, i32) {
    %c0_i32 = arith.constant 0 : i32
    %c0_i32_0 = arith.constant 0 : i32
    %c0_i32_1 = arith.constant 0 : i32
    return %c0_i32, %c0_i32_0 : i32, i32
  }
  func.func @transform_6(%arg0: i32) -> (i32, i32) {
    %c0_i32 = arith.constant 0 : i32
    %c0_i32_0 = arith.constant 0 : i32
    %c0_i32_1 = arith.constant 0 : i32
    return %c0_i32, %c0_i32_0 : i32, i32
  }
  func.func @transform_7(%arg0: i32) -> (i32, i32) {
    %c0_i32 = arith.constant 0 : i32
    %c0_i32_0 = arith.constant 0 : i32
    %c0_i32_1 = arith.constant 0 : i32
    return %c0_i32, %c0_i32_0 : i32, i32
  }
  func.func @transform_8(%arg0: i32) -> (i32, i32) {
    %c0_i32 = arith.constant 0 : i32
    %c0_i32_0 = arith.constant 0 : i32
    %c0_i32_1 = arith.constant 0 : i32
    return %c0_i32, %c0_i32_0 : i32, i32
  }
  func.func @transform_9(%arg0: i32) -> (i32, i32) {
    %c0_i32 = arith.constant 0 : i32
    %c0_i32_0 = arith.constant 0 : i32
    %c0_i32_1 = arith.constant 0 : i32
    return %c0_i32, %c0_i32_0 : i32, i32
  }
  func.func @transform_10(%arg0: i32) -> (i32, i32) {
    %c0_i32 = arith.constant 0 : i32
    %c0_i32_0 = arith.constant 0 : i32
    %c0_i32_1 = arith.constant 0 : i32
    return %c0_i32, %c0_i32_0 : i32, i32
  }
  func.func @transform_11(%arg0: i32) -> (i32, i32) {
    %c0_i32 = arith.constant 0 : i32
    %c0_i32_0 = arith.constant 0 : i32
    %c0_i32_1 = arith.constant 0 : i32
    return %c0_i32, %c0_i32_0 : i32, i32
  }
  func.func @transform_12(%arg0: i32) -> (i32, i32) {
    %c0_i32 = arith.constant 0 : i32
    %c0_i32_0 = arith.constant 0 : i32
    %c0_i32_1 = arith.constant 0 : i32
    return %c0_i32, %c0_i32_0 : i32, i32
  }
  func.func @transform_13(%arg0: i32) -> (i32, i32) {
    %c0_i32 = arith.constant 0 : i32
    %c0_i32_0 = arith.constant 0 : i32
    %c0_i32_1 = arith.constant 0 : i32
    return %c0_i32, %c0_i32_0 : i32, i32
  }
  func.func @transform_14(%arg0: i32) -> (i32, i32) {
    %c0_i32 = arith.constant 0 : i32
    %c0_i32_0 = arith.constant 0 : i32
    %c0_i32_1 = arith.constant 0 : i32
    return %c0_i32, %c0_i32_0 : i32, i32
  }
  func.func @transform_15(%arg0: i32) -> (i32, i32) {
    %c0_i32 = arith.constant 0 : i32
    %c0_i32_0 = arith.constant 0 : i32
    %c0_i32_1 = arith.constant 0 : i32
    return %c0_i32, %c0_i32_0 : i32, i32
  }
  func.func @transform_16(%arg0: i32) -> (i32, i32, i32) {
    %c0_i32 = arith.constant 0 : i32
    %c0_i32_0 = arith.constant 0 : i32
    %c0_i32_1 = arith.constant 0 : i32
    return %arg0, %c0_i32, %c0_i32_0 : i32, i32, i32
  }
}

</mosaic_0001>

<llo_original>
// kernel: inception_block.1
$region0: #{inception_block.1}
  #allocation0 [shape = 'u32[]', space=smem, size = 0x4, offset = 0x4, fixed_abs, tag = 'smem constant byte address 0x4 - core index']
  #allocation1 [shape = 'u32[72,128]{1,0:T(1,128)}', space=vmem, size = 0x9000, scoped, tag = 'internal scratch']
  %s0 = inlined_call_operand.vmem [shape: f32[2,4,256], index: 0, kind: input, shape index: {}]
  %s1 = inlined_call_operand.vmem [shape: bf16[12,4], index: 1, kind: input, shape index: {}]
  %s2 = inlined_call_operand.vmem [shape: f32[12,1], index: 2, kind: input, shape index: {}]
  %s3 = inlined_call_operand.vmem [shape: f32[12,1], index: 3, kind: input, shape index: {}]
  %s4 = inlined_call_operand.vmem [shape: bf16[8,36], index: 4, kind: input, shape index: {}]
  %s5 = inlined_call_operand.vmem [shape: f32[8,1], index: 5, kind: input, shape index: {}]
  %s6 = inlined_call_operand.vmem [shape: f32[8,1], index: 6, kind: input, shape index: {}]
  %s7 = inlined_call_operand.vmem [shape: bf16[4,36], index: 7, kind: input, shape index: {}]
  %s8 = inlined_call_operand.vmem [shape: f32[4,1], index: 8, kind: input, shape index: {}]
  %s9 = inlined_call_operand.vmem [shape: f32[4,1], index: 9, kind: input, shape index: {}]
  %s10 = inlined_call_operand.vmem [shape: bf16[4,36], index: 10, kind: input, shape index: {}]
  %s11 = inlined_call_operand.vmem [shape: f32[4,1], index: 11, kind: input, shape index: {}]
  %s12 = inlined_call_operand.vmem [shape: f32[4,1], index: 12, kind: input, shape index: {}]
  %s13 = inlined_call_operand.vmem [shape: bf16[4,4], index: 13, kind: input, shape index: {}]
  %s14 = inlined_call_operand.vmem [shape: f32[4,1], index: 14, kind: input, shape index: {}]
  %s15 = inlined_call_operand.vmem [shape: f32[4,1], index: 15, kind: input, shape index: {}]
  %s16 = inlined_call_operand.vmem [shape: f32[2,20,256], index: 16, kind: output, shape index: {}]
  %s17 = sld [smem:[#allocation0]]
  $region97: #{inception_block.1} parent=0
    _
  %s19 = ssub.s32 1, %s17
  %s20 = scalar_select 0, %s19, %s17
  loop: start=0, step=1, limit=4
  $region2: #{inception_block.1} parent=0 // loop_pre_header
    _
  $region3: #{inception_block.1} parent=0 // loop_header
    %s22 = sphi 0, %s26
    %p23 = scmp.ge.s32.totalorder %s22, 4
    %s32 = sphi 0, %s34
    %s35 = sphi 0, %s32
    %s36 = sphi 0, %s35
    %s52 = sphi 0, %s36
    %s56 = sphi 0, %s56
    %s58 = sphi 0, %s56
    %s59 = sphi 0, %s58
    %s73 = sphi 0, %s59
    %s77 = sphi 0, %s77
    %s79 = sphi 0, %s77
    %s80 = sphi 0, %s79
    %s94 = sphi 0, %s80
    %s98 = sphi 0, %s98
    %s100 = sphi 0, %s98
    %s101 = sphi 0, %s100
    %s115 = sphi 0, %s101
    %s119 = sphi 0, %s119
    %s121 = sphi 0, %s119
    %s122 = sphi 0, %s121
    %s136 = sphi 0, %s122
    %s140 = sphi 0, %s140
    %s142 = sphi 0, %s140
    %s143 = sphi 0, %s142
    %s157 = sphi 0, %s143
    %s161 = sphi 0, %s161
    %s163 = sphi 0, %s161
    %s164 = sphi 0, %s163
    %s178 = sphi 0, %s164
    %s182 = sphi 0, %s182
    %s184 = sphi 0, %s182
    %s185 = sphi 0, %s184
    %s199 = sphi 0, %s185
    %s203 = sphi 0, %s203
    %s205 = sphi 0, %s203
    %s206 = sphi 0, %s205
    %s220 = sphi 0, %s206
    %s224 = sphi 0, %s224
    %s226 = sphi 0, %s224
    %s227 = sphi 0, %s226
    %s241 = sphi 0, %s227
    %s245 = sphi 0, %s245
    %s247 = sphi 0, %s245
    %s248 = sphi 0, %s247
    %s262 = sphi 0, %s248
    %s266 = sphi 0, %s266
    %s268 = sphi 0, %s266
    %s269 = sphi 0, %s268
    %s283 = sphi 0, %s269
    %s287 = sphi 0, %s287
    %s289 = sphi 0, %s287
    %s290 = sphi 0, %s289
    %s304 = sphi 0, %s290
    %s308 = sphi 0, %s308
    %s310 = sphi 0, %s308
    %s311 = sphi 0, %s310
    %s325 = sphi 0, %s311
    %s329 = sphi 0, %s329
    %s331 = sphi 0, %s329
    %s332 = sphi 0, %s331
    %s346 = sphi 0, %s332
    %s350 = sphi 0, %s350
    %s352 = sphi 0, %s350
    %s353 = sphi 0, %s352
    %s367 = sphi 0, %s353
    %s373 = sphi 0, %s375
    %s376 = sphi 0, %s373
    %s377 = sphi 0, %s376
    %s393 = sphi 0, %s377
  $region4: #{inception_block.1} parent=0 // loop_header_branch
    %25 = sbr.rel (%p23) target = $region8
  $region5: #{inception_block.1} parent=0 // loop_body
    %s27 = ssub.s32 %s22, 1
    %s28 = ssub.s32 %s22, 2
    %s29 = sadd.s32 %s22, 1
    %s30 = ssub.s32 %s22, %s29
    %p31 = scmp.eq.s32.totalorder %s30, 0
    %s33 = sadd.s32 %s32, 1
    %s34 = scalar_select %p31, %s32, %s33
    %p37 = pneg %p31
    %p38 = scmp.eq.s32.totalorder %s22, 1
    %p39 = por %p37, %p38
    %p40 = scmp.ne.s32.totalorder %s32, %s35
    %p41 = scmp.eq.s32.totalorder %s22, 0
    %p42 = por %p40, %p41
    %p43 = scmp.ne.s32.totalorder %s32, %s35
    %p44 = scmp.eq.s32.totalorder %s27, 1
    %p45 = por %p43, %p44
    %p46 = scmp.ne.s32.totalorder %s35, %s36
    %p47 = scmp.eq.s32.totalorder %s27, 0
    %p48 = por %p46, %p47
    %p49 = scmp.ne.s32.totalorder %s35, %s36
    %p50 = scmp.eq.s32.totalorder %s28, 1
    %p51 = por %p49, %p50
    %p53 = scmp.ne.s32.totalorder %s36, %s52
    %p54 = scmp.eq.s32.totalorder %s28, 0
    %p55 = por %p53, %p54
    %s57 = sadd.s32 %s56, 1
    %p60 = scmp.eq.s32.totalorder %s22, 1
    %p61 = scmp.ne.s32.totalorder %s56, %s58
    %p62 = scmp.eq.s32.totalorder %s22, 0
    %p63 = por %p61, %p62
    %p64 = scmp.ne.s32.totalorder %s56, %s58
    %p65 = scmp.eq.s32.totalorder %s27, 1
    %p66 = por %p64, %p65
    %p67 = scmp.ne.s32.totalorder %s58, %s59
    %p68 = scmp.eq.s32.totalorder %s27, 0
    %p69 = por %p67, %p68
    %p70 = scmp.ne.s32.totalorder %s58, %s59
    %p71 = scmp.eq.s32.totalorder %s28, 1
    %p72 = por %p70, %p71
    %p74 = scmp.ne.s32.totalorder %s59, %s73
    %p75 = scmp.eq.s32.totalorder %s28, 0
    %p76 = por %p74, %p75
    %s78 = sadd.s32 %s77, 1
    %p81 = scmp.eq.s32.totalorder %s22, 1
    %p82 = scmp.ne.s32.totalorder %s77, %s79
    %p83 = scmp.eq.s32.totalorder %s22, 0
    %p84 = por %p82, %p83
    %p85 = scmp.ne.s32.totalorder %s77, %s79
    %p86 = scmp.eq.s32.totalorder %s27, 1
    %p87 = por %p85, %p86
    %p88 = scmp.ne.s32.totalorder %s79, %s80
    %p89 = scmp.eq.s32.totalorder %s27, 0
    %p90 = por %p88, %p89
    %p91 = scmp.ne.s32.totalorder %s79, %s80
    %p92 = scmp.eq.s32.totalorder %s28, 1
    %p93 = por %p91, %p92
    %p95 = scmp.ne.s32.totalorder %s80, %s94
    %p96 = scmp.eq.s32.totalorder %s28, 0
    %p97 = por %p95, %p96
    %s99 = sadd.s32 %s98, 1
    %p102 = scmp.eq.s32.totalorder %s22, 1
    %p103 = scmp.ne.s32.totalorder %s98, %s100
    %p104 = scmp.eq.s32.totalorder %s22, 0
    %p105 = por %p103, %p104
    %p106 = scmp.ne.s32.totalorder %s98, %s100
    %p107 = scmp.eq.s32.totalorder %s27, 1
    %p108 = por %p106, %p107
    %p109 = scmp.ne.s32.totalorder %s100, %s101
    %p110 = scmp.eq.s32.totalorder %s27, 0
    %p111 = por %p109, %p110
    %p112 = scmp.ne.s32.totalorder %s100, %s101
    %p113 = scmp.eq.s32.totalorder %s28, 1
    %p114 = por %p112, %p113
    %p116 = scmp.ne.s32.totalorder %s101, %s115
    %p117 = scmp.eq.s32.totalorder %s28, 0
    %p118 = por %p116, %p117
    %s120 = sadd.s32 %s119, 1
    %p123 = scmp.eq.s32.totalorder %s22, 1
    %p124 = scmp.ne.s32.totalorder %s119, %s121
    %p125 = scmp.eq.s32.totalorder %s22, 0
    %p126 = por %p124, %p125
    %p127 = scmp.ne.s32.totalorder %s119, %s121
    %p128 = scmp.eq.s32.totalorder %s27, 1
    %p129 = por %p127, %p128
    %p130 = scmp.ne.s32.totalorder %s121, %s122
    %p131 = scmp.eq.s32.totalorder %s27, 0
    %p132 = por %p130, %p131
    %p133 = scmp.ne.s32.totalorder %s121, %s122
    %p134 = scmp.eq.s32.totalorder %s28, 1
    %p135 = por %p133, %p134
    %p137 = scmp.ne.s32.totalorder %s122, %s136
    %p138 = scmp.eq.s32.totalorder %s28, 0
    %p139 = por %p137, %p138
    %s141 = sadd.s32 %s140, 1
    %p144 = scmp.eq.s32.totalorder %s22, 1
    %p145 = scmp.ne.s32.totalorder %s140, %s142
    %p146 = scmp.eq.s32.totalorder %s22, 0
    %p147 = por %p145, %p146
    %p148 = scmp.ne.s32.totalorder %s140, %s142
    %p149 = scmp.eq.s32.totalorder %s27, 1
    %p150 = por %p148, %p149
    %p151 = scmp.ne.s32.totalorder %s142, %s143
    %p152 = scmp.eq.s32.totalorder %s27, 0
    %p153 = por %p151, %p152
    %p154 = scmp.ne.s32.totalorder %s142, %s143
    %p155 = scmp.eq.s32.totalorder %s28, 1
    %p156 = por %p154, %p155
    %p158 = scmp.ne.s32.totalorder %s143, %s157
    %p159 = scmp.eq.s32.totalorder %s28, 0
    %p160 = por %p158, %p159
    %s162 = sadd.s32 %s161, 1
    %p165 = scmp.eq.s32.totalorder %s22, 1
    %p166 = scmp.ne.s32.totalorder %s161, %s163
    %p167 = scmp.eq.s32.totalorder %s22, 0
    %p168 = por %p166, %p167
    %p169 = scmp.ne.s32.totalorder %s161, %s163
    %p170 = scmp.eq.s32.totalorder %s27, 1
    %p171 = por %p169, %p170
    %p172 = scmp.ne.s32.totalorder %s163, %s164
    %p173 = scmp.eq.s32.totalorder %s27, 0
    %p174 = por %p172, %p173
    %p175 = scmp.ne.s32.totalorder %s163, %s164
    %p176 = scmp.eq.s32.totalorder %s28, 1
    %p177 = por %p175, %p176
    %p179 = scmp.ne.s32.totalorder %s164, %s178
    %p180 = scmp.eq.s32.totalorder %s28, 0
    %p181 = por %p179, %p180
    %s183 = sadd.s32 %s182, 1
    %p186 = scmp.eq.s32.totalorder %s22, 1
    %p187 = scmp.ne.s32.totalorder %s182, %s184
    %p188 = scmp.eq.s32.totalorder %s22, 0
    %p189 = por %p187, %p188
    %p190 = scmp.ne.s32.totalorder %s182, %s184
    %p191 = scmp.eq.s32.totalorder %s27, 1
    %p192 = por %p190, %p191
    %p193 = scmp.ne.s32.totalorder %s184, %s185
    %p194 = scmp.eq.s32.totalorder %s27, 0
    %p195 = por %p193, %p194
    %p196 = scmp.ne.s32.totalorder %s184, %s185
    %p197 = scmp.eq.s32.totalorder %s28, 1
    %p198 = por %p196, %p197
    %p200 = scmp.ne.s32.totalorder %s185, %s199
    %p201 = scmp.eq.s32.totalorder %s28, 0
    %p202 = por %p200, %p201
    %s204 = sadd.s32 %s203, 1
    %p207 = scmp.eq.s32.totalorder %s22, 1
    %p208 = scmp.ne.s32.totalorder %s203, %s205
    %p209 = scmp.eq.s32.totalorder %s22, 0
    %p210 = por %p208, %p209
    %p211 = scmp.ne.s32.totalorder %s203, %s205
    %p212 = scmp.eq.s32.totalorder %s27, 1
    %p213 = por %p211, %p212
    %p214 = scmp.ne.s32.totalorder %s205, %s206
    %p215 = scmp.eq.s32.totalorder %s27, 0
    %p216 = por %p214, %p215
    %p217 = scmp.ne.s32.totalorder %s205, %s206
    %p218 = scmp.eq.s32.totalorder %s28, 1
    %p219 = por %p217, %p218
    %p221 = scmp.ne.s32.totalorder %s206, %s220
    %p222 = scmp.eq.s32.totalorder %s28, 0
    %p223 = por %p221, %p222
    %s225 = sadd.s32 %s224, 1
    %p228 = scmp.eq.s32.totalorder %s22, 1
    %p229 = scmp.ne.s32.totalorder %s224, %s226
    %p230 = scmp.eq.s32.totalorder %s22, 0
    %p231 = por %p229, %p230
    %p232 = scmp.ne.s32.totalorder %s224, %s226
    %p233 = scmp.eq.s32.totalorder %s27, 1
    %p234 = por %p232, %p233
    %p235 = scmp.ne.s32.totalorder %s226, %s227
    %p236 = scmp.eq.s32.totalorder %s27, 0
    %p237 = por %p235, %p236
    %p238 = scmp.ne.s32.totalorder %s226, %s227
    %p239 = scmp.eq.s32.totalorder %s28, 1
    %p240 = por %p238, %p239
    %p242 = scmp.ne.s32.totalorder %s227, %s241
    %p243 = scmp.eq.s32.totalorder %s28, 0
    %p244 = por %p242, %p243
    %s246 = sadd.s32 %s245, 1
    %p249 = scmp.eq.s32.totalorder %s22, 1
    %p250 = scmp.ne.s32.totalorder %s245, %s247
    %p251 = scmp.eq.s32.totalorder %s22, 0
    %p252 = por %p250, %p251
    %p253 = scmp.ne.s32.totalorder %s245, %s247
    %p254 = scmp.eq.s32.totalorder %s27, 1
    %p255 = por %p253, %p254
    %p256 = scmp.ne.s32.totalorder %s247, %s248
    %p257 = scmp.eq.s32.totalorder %s27, 0
    %p258 = por %p256, %p257
    %p259 = scmp.ne.s32.totalorder %s247, %s248
    %p260 = scmp.eq.s32.totalorder %s28, 1
    %p261 = por %p259, %p260
    %p263 = scmp.ne.s32.totalorder %s248, %s262
    %p264 = scmp.eq.s32.totalorder %s28, 0
    %p265 = por %p263, %p264
    %s267 = sadd.s32 %s266, 1
    %p270 = scmp.eq.s32.totalorder %s22, 1
    %p271 = scmp.ne.s32.totalorder %s266, %s268
    %p272 = scmp.eq.s32.totalorder %s22, 0
    %p273 = por %p271, %p272
    %p274 = scmp.ne.s32.totalorder %s266, %s268
    %p275 = scmp.eq.s32.totalorder %s27, 1
    %p276 = por %p274, %p275
    %p277 = scmp.ne.s32.totalorder %s268, %s269
    %p278 = scmp.eq.s32.totalorder %s27, 0
    %p279 = por %p277, %p278
    %p280 = scmp.ne.s32.totalorder %s268, %s269
    %p281 = scmp.eq.s32.totalorder %s28, 1
    %p282 = por %p280, %p281
    %p284 = scmp.ne.s32.totalorder %s269, %s283
    %p285 = scmp.eq.s32.totalorder %s28, 0
    %p286 = por %p284, %p285
    %s288 = sadd.s32 %s287, 1
    %p291 = scmp.eq.s32.totalorder %s22, 1
    %p292 = scmp.ne.s32.totalorder %s287, %s289
    %p293 = scmp.eq.s32.totalorder %s22, 0
    %p294 = por %p292, %p293
    %p295 = scmp.ne.s32.totalorder %s287, %s289
    %p296 = scmp.eq.s32.totalorder %s27, 1
    %p297 = por %p295, %p296
    %p298 = scmp.ne.s32.totalorder %s289, %s290
    %p299 = scmp.eq.s32.totalorder %s27, 0
    %p300 = por %p298, %p299
    %p301 = scmp.ne.s32.totalorder %s289, %s290
    %p302 = scmp.eq.s32.totalorder %s28, 1
    %p303 = por %p301, %p302
    %p305 = scmp.ne.s32.totalorder %s290, %s304
    %p306 = scmp.eq.s32.totalorder %s28, 0
    %p307 = por %p305, %p306
    %s309 = sadd.s32 %s308, 1
    %p312 = scmp.eq.s32.totalorder %s22, 1
    %p313 = scmp.ne.s32.totalorder %s308, %s310
    %p314 = scmp.eq.s32.totalorder %s22, 0
    %p315 = por %p313, %p314
    %p316 = scmp.ne.s32.totalorder %s308, %s310
    %p317 = scmp.eq.s32.totalorder %s27, 1
    %p318 = por %p316, %p317
    %p319 = scmp.ne.s32.totalorder %s310, %s311
    %p320 = scmp.eq.s32.totalorder %s27, 0
    %p321 = por %p319, %p320
    %p322 = scmp.ne.s32.totalorder %s310, %s311
    %p323 = scmp.eq.s32.totalorder %s28, 1
    %p324 = por %p322, %p323
    %p326 = scmp.ne.s32.totalorder %s311, %s325
    %p327 = scmp.eq.s32.totalorder %s28, 0
    %p328 = por %p326, %p327
    %s330 = sadd.s32 %s329, 1
    %p333 = scmp.eq.s32.totalorder %s22, 1
    %p334 = scmp.ne.s32.totalorder %s329, %s331
    %p335 = scmp.eq.s32.totalorder %s22, 0
    %p336 = por %p334, %p335
    %p337 = scmp.ne.s32.totalorder %s329, %s331
    %p338 = scmp.eq.s32.totalorder %s27, 1
    %p339 = por %p337, %p338
    %p340 = scmp.ne.s32.totalorder %s331, %s332
    %p341 = scmp.eq.s32.totalorder %s27, 0
    %p342 = por %p340, %p341
    %p343 = scmp.ne.s32.totalorder %s331, %s332
    %p344 = scmp.eq.s32.totalorder %s28, 1
    %p345 = por %p343, %p344
    %p347 = scmp.ne.s32.totalorder %s332, %s346
    %p348 = scmp.eq.s32.totalorder %s28, 0
    %p349 = por %p347, %p348
    %s351 = sadd.s32 %s350, 1
    %p354 = scmp.eq.s32.totalorder %s22, 1
    %p355 = scmp.ne.s32.totalorder %s350, %s352
    %p356 = scmp.eq.s32.totalorder %s22, 0
    %p357 = por %p355, %p356
    %p358 = scmp.ne.s32.totalorder %s350, %s352
    %p359 = scmp.eq.s32.totalorder %s27, 1
    %p360 = por %p358, %p359
    %p361 = scmp.ne.s32.totalorder %s352, %s353
    %p362 = scmp.eq.s32.totalorder %s27, 0
    %p363 = por %p361, %p362
    %p364 = scmp.ne.s32.totalorder %s352, %s353
    %p365 = scmp.eq.s32.totalorder %s28, 1
    %p366 = por %p364, %p365
    %p368 = scmp.ne.s32.totalorder %s353, %s367
    %p369 = scmp.eq.s32.totalorder %s28, 0
    %p370 = por %p368, %p369
    %s371 = ssub.s32 %s22, %s29
    %p372 = scmp.eq.s32.totalorder %s371, 0
    %s374 = sadd.s32 %s373, 1
    %s375 = scalar_select %p372, %s373, %s374
    %p378 = pneg %p372
    %p379 = scmp.eq.s32.totalorder %s22, 1
    %p380 = por %p378, %p379
    %p381 = scmp.ne.s32.totalorder %s373, %s376
    %p382 = scmp.eq.s32.totalorder %s22, 0
    %p383 = por %p381, %p382
    %p384 = scmp.ne.s32.totalorder %s373, %s376
    %p385 = scmp.eq.s32.totalorder %s27, 1
    %p386 = por %p384, %p385
    %p387 = scmp.ne.s32.totalorder %s376, %s377
    %p388 = scmp.eq.s32.totalorder %s27, 0
    %p389 = por %p387, %p388
    %p390 = scmp.ne.s32.totalorder %s376, %s377
    %p391 = scmp.eq.s32.totalorder %s28, 1
    %p392 = por %p390, %p391
    %p394 = scmp.ne.s32.totalorder %s377, %s393
    %p395 = scmp.eq.s32.totalorder %s28, 0
    %p396 = por %p394, %p395
    %p397 = scmp.le.s32.totalorder 1, %s22
    %p398 = scmp.lt.s32.totalorder %s22, 3
    %p399 = pnand %p397, %p398
    %p400 = pneg %p399
    // Predicated region
    $region9: #{inception_block.1} parent=5 // pred_check
      _
    $region10: #{inception_block.1} parent=5 // pred_check_branch
      %402 = sbr.rel (%p399) target = $region12
    $region11: #{inception_block.1} parent=5 // pred_region
      %s403 = ssub.s32 %s22, 1
      // Predicated region
      $region13: #{inception_block.1} parent=11 // pred_check
        %p404 = pneg %p69
      $region14: #{inception_block.1} parent=11 // pred_check_branch
        %406 = sbr.rel (%p404) target = $region16
      $region15: #{inception_block.1} parent=11 // pred_region
        _
      $region16: #{inception_block.1} parent=11 // pred_fallthru
        _
      // Predicated region
      $region17: #{inception_block.1} parent=11 // pred_check
        %p407 = pneg %p90
      $region18: #{inception_block.1} parent=11 // pred_check_branch
        %409 = sbr.rel (%p407) target = $region20
      $region19: #{inception_block.1} parent=11 // pred_region
        _
      $region20: #{inception_block.1} parent=11 // pred_fallthru
        _
      // Predicated region
      $region21: #{inception_block.1} parent=11 // pred_check
        %p410 = pneg %p111
      $region22: #{inception_block.1} parent=11 // pred_check_branch
        %412 = sbr.rel (%p410) target = $region24
      $region23: #{inception_block.1} parent=11 // pred_region
        _
      $region24: #{inception_block.1} parent=11 // pred_fallthru
        _
      // Predicated region
      $region25: #{inception_block.1} parent=11 // pred_check
        %p413 = pneg %p132
      $region26: #{inception_block.1} parent=11 // pred_check_branch
        %415 = sbr.rel (%p413) target = $region28
      $region27: #{inception_block.1} parent=11 // pred_region
        _
      $region28: #{inception_block.1} parent=11 // pred_fallthru
        _
      // Predicated region
      $region29: #{inception_block.1} parent=11 // pred_check
        %p416 = pneg %p153
      $region30: #{inception_block.1} parent=11 // pred_check_branch
        %418 = sbr.rel (%p416) target = $region32
      $region31: #{inception_block.1} parent=11 // pred_region
        _
      $region32: #{inception_block.1} parent=11 // pred_fallthru
        _
      // Predicated region
      $region33: #{inception_block.1} parent=11 // pred_check
        %p419 = pneg %p174
      $region34: #{inception_block.1} parent=11 // pred_check_branch
        %421 = sbr.rel (%p419) target = $region36
      $region35: #{inception_block.1} parent=11 // pred_region
        _
      $region36: #{inception_block.1} parent=11 // pred_fallthru
        _
      // Predicated region
      $region37: #{inception_block.1} parent=11 // pred_check
        %p422 = pneg %p195
      $region38: #{inception_block.1} parent=11 // pred_check_branch
        %424 = sbr.rel (%p422) target = $region40
      $region39: #{inception_block.1} parent=11 // pred_region
        _
      $region40: #{inception_block.1} parent=11 // pred_fallthru
        _
      // Predicated region
      $region41: #{inception_block.1} parent=11 // pred_check
        %p425 = pneg %p216
      $region42: #{inception_block.1} parent=11 // pred_check_branch
        %427 = sbr.rel (%p425) target = $region44
      $region43: #{inception_block.1} parent=11 // pred_region
        _
      $region44: #{inception_block.1} parent=11 // pred_fallthru
        _
      // Predicated region
      $region45: #{inception_block.1} parent=11 // pred_check
        %p428 = pneg %p237
      $region46: #{inception_block.1} parent=11 // pred_check_branch
        %430 = sbr.rel (%p428) target = $region48
      $region47: #{inception_block.1} parent=11 // pred_region
        _
      $region48: #{inception_block.1} parent=11 // pred_fallthru
        _
      // Predicated region
      $region49: #{inception_block.1} parent=11 // pred_check
        %p431 = pneg %p258
      $region50: #{inception_block.1} parent=11 // pred_check_branch
        %433 = sbr.rel (%p431) target = $region52
      $region51: #{inception_block.1} parent=11 // pred_region
        _
      $region52: #{inception_block.1} parent=11 // pred_fallthru
        _
      // Predicated region
      $region53: #{inception_block.1} parent=11 // pred_check
        %p434 = pneg %p279
      $region54: #{inception_block.1} parent=11 // pred_check_branch
        %436 = sbr.rel (%p434) target = $region56
      $region55: #{inception_block.1} parent=11 // pred_region
        _
      $region56: #{inception_block.1} parent=11 // pred_fallthru
        _
      // Predicated region
      $region57: #{inception_block.1} parent=11 // pred_check
        %p437 = pneg %p300
      $region58: #{inception_block.1} parent=11 // pred_check_branch
        %439 = sbr.rel (%p437) target = $region60
      $region59: #{inception_block.1} parent=11 // pred_region
        _
      $region60: #{inception_block.1} parent=11 // pred_fallthru
        _
      // Predicated region
      $region61: #{inception_block.1} parent=11 // pred_check
        %p440 = pneg %p321
      $region62: #{inception_block.1} parent=11 // pred_check_branch
        %442 = sbr.rel (%p440) target = $region64
      $region63: #{inception_block.1} parent=11 // pred_region
        _
      $region64: #{inception_block.1} parent=11 // pred_fallthru
        _
      // Predicated region
      $region65: #{inception_block.1} parent=11 // pred_check
        %p443 = pneg %p342
      $region66: #{inception_block.1} parent=11 // pred_check_branch
        %445 = sbr.rel (%p443) target = $region68
      $region67: #{inception_block.1} parent=11 // pred_region
        _
      $region68: #{inception_block.1} parent=11 // pred_fallthru
        _
      // Predicated region
      $region69: #{inception_block.1} parent=11 // pred_check
        %p446 = pneg %p363
      $region70: #{inception_block.1} parent=11 // pred_check_branch
        %448 = sbr.rel (%p446) target = $region72
      $region71: #{inception_block.1} parent=11 // pred_region
        _
      $region72: #{inception_block.1} parent=11 // pred_fallthru
        _
    $region12: #{inception_block.1} parent=5 // pred_fallthru
      _
    %p449 = scmp.lt.s32.totalorder %s22, 2
    // Predicated region
    $region73: #{inception_block.1} parent=5 // pred_check
      %p450 = pneg %p449
    $region74: #{inception_block.1} parent=5 // pred_check_branch
      %452 = sbr.rel (%p450) target = $region76
    $region75: #{inception_block.1} parent=5 // pred_region
      // Predicated region
      $region77: #{inception_block.1} parent=75 // pred_check
        %p453 = pneg %p42
      $region78: #{inception_block.1} parent=75 // pred_check_branch
        %455 = sbr.rel (%p453) target = $region80
      $region79: #{inception_block.1} parent=75 // pred_region
        %p456 = scmp.lt.s32.totalorder %s22, 1
        %s457 = scalar_select %p456, %s22, 1
        %s458 = smul.addr %s457, 2
        %s459 = smul.addr %s458, 4
        %s460 = scalar_lea.vmem %s0, %s459
      $region80: #{inception_block.1} parent=75 // pred_fallthru
        _
    $region76: #{inception_block.1} parent=5 // pred_fallthru
      _
    %p461 = scmp.le.s32.totalorder 1, %s22
    %p462 = scmp.lt.s32.totalorder %s22, 3
    %p463 = pnand %p461, %p462
    %p464 = pneg %p463
    // Predicated region
    $region81: #{inception_block.1} parent=5 // pred_check
      _
    $region82: #{inception_block.1} parent=5 // pred_check_branch
      %466 = sbr.rel (%p463) target = $region84
    $region83: #{inception_block.1} parent=5 // pred_region
      %s467 = ssub.s32 %s22, 1
      %p468 = scmp.lt.s32.totalorder %s27, 1
      %s469 = scalar_select %p468, %s27, 1
      %s470 = smul.addr %s469, 2
      %s471 = smul.addr %s470, 4
      %s472 = scalar_lea.vmem %s0, %s471
      %p473 = pneg %p48
      %p474 = pneg %p45
      %p475 = pneg %p69
      %p476 = pneg %p66
      %p477 = pneg %p90
      %p478 = pneg %p87
      %p479 = pneg %p111
      %p480 = pneg %p108
      %p481 = pneg %p132
      %p482 = pneg %p129
      %p483 = pneg %p153
      %p484 = pneg %p150
      %p485 = pneg %p174
      %p486 = pneg %p171
      %p487 = pneg %p195
      %p488 = pneg %p192
      %p489 = pneg %p216
      %p490 = pneg %p213
      %p491 = pneg %p237
      %p492 = pneg %p234
      %p493 = pneg %p258
      %p494 = pneg %p255
      %p495 = pneg %p279
      %p496 = pneg %p276
      %p497 = pneg %p300
      %p498 = pneg %p297
      %p499 = pneg %p321
      %p500 = pneg %p318
      %p501 = pneg %p342
      %p502 = pneg %p339
      %p503 = pneg %p363
      %p504 = pneg %p360
      %p505 = pneg %p389
      %p506 = pneg %p386
      %p507 = scmp.lt.s32.totalorder %s27, 1
      %s508 = scalar_select %p507, %s27, 1
      %s509 = smul.addr %s508, 6
      %s510 = smul.addr %s509, 8
      %s511 = scalar_lea.vmem %s16, %s510
      %p512 = scmp.lt.s32.totalorder %s27, 1
      %s513 = scalar_select %p512, %s27, 1
      %s514 = smul.addr %s513, 2
      %s515 = smul.addr %s514, 4
      %s516 = scalar_lea.vmem %s0, %s515
      %p517 = scmp.lt.s32.totalorder %s27, 1
      %s518 = scalar_select %p517, %s27, 1
      %s519 = smul.addr %s518, 6
      %s520 = smul.addr %s519, 8
      %s521 = scalar_lea.vmem %s16, %s520
      %v523 = vld [vmem:[%s516] sm:$0xff]
      %v524 = vlaneseq
      %v525 = vand.u32 %v524, 127
      %v526 = vadd.s32 %v525, 128
      %v527 = vand.u32 %v525, 15
      %v528 = vand.u32 %v526, 15
      %vm529 = vcmp.ge.s32.totalorder %v527, 1
      %vm530 = vcmp.ge.s32.totalorder %v528, 1
      %vm531 = vcmp.lt.s32.totalorder %v527, 15
      %vm532 = vcmp.lt.s32.totalorder %v528, 15
      %534 = vst [vmem:[#allocation1] ss:$2 sm:$0xff] %v523
      %v535 = vld.sshfl [vmem:[#allocation1] sm:$0xff pattern:$0x75316420]
      %v536 = vld.sshfl [vmem:[#allocation1 + $0x8] sm:$0xff pattern:$0x75316420]
      %v539 = vpack.c.bf16 %v535, %v535
      %v540 = vpack.c.bf16 %v536, %v536
      %v541 = vld [vmem:[%s1] sm:$0xf]
      %v542 = vld [vmem:[%s1 + $0x4] sm:$0x3]
      %v545 = vunpack.c.l.b16 %v541
      %v546 = vunpack.c.l.b16 %v542
      %v547 = vpack.c.b16 %v546, %v545
      %vm548 = vcmask 31744
      %v550 = vsel %vm548, %v547, 0
      %vm552 = vcmask 1041408
      %v554 = vsel %vm552, %v539, 0
      %v557 = vsel %vm552, %v540, 0
      %559 = vmatpush.bf16.msra.mxu0 0
      %560 = vmatpush.bf16.msra.mxu0 0
      %561 = vmatpush.bf16.msra.mxu0 0
      %562 = vmatpush.bf16.msra.mxu0 0
      %563 = vmatpush.bf16.msra.mxu0 0
      %564 = vmatpush.bf16.msra.mxu0 0
      %565 = vmatpush.bf16.msra.mxu0 0
      %566 = vmatpush.bf16.msra.mxu0 %v554
      %567 = vmatmul.bf16.gmra.mxu0 %v550
      %v568 = vpop.f32.mrf.mxu0
      %v569 = vadd.f32 0.0, %v568
      %v570 = vpop.f32.mrf.mxu0
      %v571 = vadd.f32 0.0, %v570
      %572 = vdwg.mxu0
      %573 = vmatpush.bf16.msra.mxu0 0
      %574 = vmatpush.bf16.msra.mxu0 0
      %575 = vmatpush.bf16.msra.mxu0 0
      %576 = vmatpush.bf16.msra.mxu0 0
      %577 = vmatpush.bf16.msra.mxu0 0
      %578 = vmatpush.bf16.msra.mxu0 0
      %579 = vmatpush.bf16.msra.mxu0 0
      %580 = vmatpush.bf16.msra.mxu0 %v557
      %581 = vmatmul.bf16.gmra.mxu0 %v550
      %v582 = vpop.f32.mrf.mxu0
      %v583 = vadd.f32 0.0, %v582
      %v584 = vpop.f32.mrf.mxu0
      %v585 = vadd.f32 0.0, %v584
      %586 = vdwg.mxu0
      %v587 = vld [vmem:[%s2] sm:$0xff]
      %v588 = vld [vmem:[%s2 + $0x8] sm:$0xf]
      %590 = vset.pattern.permute.xlu0 0
      %591 = vperm.xlu0 %590, %v587
      %v592 = vpop.permute.xlu0 %591
      %595 = vset.pattern.permute.xlu0 0
      %596 = vperm.xlu0 %595, %v588
      %v597 = vpop.permute.xlu0 %596
      %v599 = vmul.f32 %v569, %v592
      %v600 = vmul.f32 %v583, %v592
      %v601 = vmul.f32 %v571, %v597
      %v602 = vmul.f32 %v585, %v597
      %v603 = vld [vmem:[%s3] sm:$0xff]
      %v604 = vld [vmem:[%s3 + $0x8] sm:$0xf]
      %606 = vset.pattern.permute.xlu0 0
      %607 = vperm.xlu0 %606, %v603
      %v608 = vpop.permute.xlu0 %607
      %611 = vset.pattern.permute.xlu0 0
      %612 = vperm.xlu0 %611, %v604
      %v613 = vpop.permute.xlu0 %612
      %v615 = vadd.f32 %v599, %v608
      %v616 = vadd.f32 %v600, %v608
      %v617 = vadd.f32 %v601, %v613
      %v618 = vadd.f32 %v602, %v613
      %v619 = vmax.f32 %v615, 0.0
      %v620 = vmax.f32 %v616, 0.0
      %v621 = vmax.f32 %v617, 0.0
      %v622 = vmax.f32 %v618, 0.0
      %v625 = vrot.slane %v619, 4
      %v626 = vrot.slane %v620, 4
      %627 = vrot.lane.b32.xlu0 %v625, 17
      %v628 = vpop.permute.xlu0 %627
      %629 = vrot.lane.b32.xlu0 %v626, 17
      %v630 = vpop.permute.xlu0 %629
      %vm631 = vcmask 138240
      %v632 = vsel %vm631, %v628, %v630
      %v636 = vsel %vm631, 0.0, %v628
      %v637 = vsel %vm631, %v630, 0.0
      %v638 = vsel %vm529, 1, 0
      %v639 = vsel %vm530, 1, 0
      %vm640 = vcmp.eq.s32.totalorder %v638, 1
      %vm641 = vcmp.eq.s32.totalorder %v639, 1
      %v642 = vsel %vm640, %v636, 0.0
      %v643 = vsel %vm641, %v632, 0.0
      %v644 = vsel %vm531, 1, 0
      %v645 = vsel %vm532, 1, 0
      %vm646 = vcmp.eq.s32.totalorder %v644, 1
      %vm647 = vcmp.eq.s32.totalorder %v645, 1
      %650 = vrot.lane.b32.xlu0 %v636, 126
      %v651 = vpop.permute.xlu0 %650
      %652 = vrot.lane.b32.xlu0 %v632, 126
      %v653 = vpop.permute.xlu0 %652
      %654 = vrot.lane.b32.xlu0 %v637, 126
      %v655 = vpop.permute.xlu0 %654
      %vm656 = vcmask 1031168
      %v657 = vsel %vm656, %v651, %v653
      %v658 = vsel %vm656, %v653, %v655
      %v661 = vsel %vm646, %v657, 0.0
      %v662 = vsel %vm647, %v658, 0.0
      %663 = vrot.lane.b32.xlu0 %v636, 112
      %v664 = vpop.permute.xlu0 %663
      %665 = vrot.lane.b32.xlu0 %v632, 112
      %v666 = vpop.permute.xlu0 %665
      %667 = vrot.lane.b32.xlu0 %v637, 112
      %v668 = vpop.permute.xlu0 %667
      %vm669 = vcmask 916480
      %v670 = vsel %vm669, %v664, %v666
      %v671 = vsel %vm669, %v666, %v668
      %v674 = vsel %vm640, %v670, 0.0
      %v675 = vsel %vm641, %v671, 0.0
      %676 = vrot.lane.b32.xlu0 %v636, 110
      %v677 = vpop.permute.xlu0 %676
      %678 = vrot.lane.b32.xlu0 %v632, 110
      %v679 = vpop.permute.xlu0 %678
      %680 = vrot.lane.b32.xlu0 %v637, 110
      %v681 = vpop.permute.xlu0 %680
      %vm682 = vcmask 900096
      %v683 = vsel %vm682, %v677, %v679
      %v684 = vsel %vm682, %v679, %v681
      %v687 = vsel %vm646, %v683, 0.0
      %v688 = vsel %vm647, %v684, 0.0
      %689 = vrot.lane.b32.xlu0 %v636, 96
      %v690 = vpop.permute.xlu0 %689
      %691 = vrot.lane.b32.xlu0 %v632, 96
      %v692 = vpop.permute.xlu0 %691
      %693 = vrot.lane.b32.xlu0 %v637, 96
      %v694 = vpop.permute.xlu0 %693
      %vm695 = vcmask 785408
      %v696 = vsel %vm695, %v690, %v692
      %v697 = vsel %vm695, %v692, %v694
      %v700 = vsel %vm640, %v696, 0.0
      %v701 = vsel %vm641, %v697, 0.0
      %702 = vrot.lane.b32.xlu0 %v636, 94
      %v703 = vpop.permute.xlu0 %702
      %704 = vrot.lane.b32.xlu0 %v632, 94
      %v705 = vpop.permute.xlu0 %704
      %706 = vrot.lane.b32.xlu0 %v637, 94
      %v707 = vpop.permute.xlu0 %706
      %vm708 = vcmask 769024
      %v709 = vsel %vm708, %v703, %v705
      %v710 = vsel %vm708, %v705, %v707
      %v713 = vsel %vm646, %v709, 0.0
      %v714 = vsel %vm647, %v710, 0.0
      %v715 = vrot.slane %v636, 4
      %v716 = vrot.slane %v632, 4
      %v717 = vrot.slane %v637, 4
      %718 = vrot.lane.b32.xlu0 %v715, 127
      %v719 = vpop.permute.xlu0 %718
      %720 = vrot.lane.b32.xlu0 %v716, 127
      %v721 = vpop.permute.xlu0 %720
      %722 = vrot.lane.b32.xlu0 %v717, 127
      %v723 = vpop.permute.xlu0 %722
      %vm724 = vcmask 1039360
      %v725 = vsel %vm724, %v719, %v721
      %v726 = vsel %vm724, %v721, %v723
      %v731 = vrot.slane %v674, 4
      %v732 = vrot.slane %v675, 4
      %735 = vrot.lane.b32.xlu0 %v636, 111
      %v736 = vpop.permute.xlu0 %735
      %737 = vrot.lane.b32.xlu0 %v632, 111
      %v738 = vpop.permute.xlu0 %737
      %739 = vrot.lane.b32.xlu0 %v637, 111
      %v740 = vpop.permute.xlu0 %739
      %vm741 = vcmask 908288
      %v742 = vsel %vm741, %v736, %v738
      %v743 = vsel %vm741, %v738, %v740
      %v748 = vrot.slane %v687, 4
      %v749 = vrot.slane %v688, 4
      %752 = vrot.lane.b32.xlu0 %v715, 95
      %v753 = vpop.permute.xlu0 %752
      %754 = vrot.lane.b32.xlu0 %v716, 95
      %v755 = vpop.permute.xlu0 %754
      %756 = vrot.lane.b32.xlu0 %v717, 95
      %v757 = vpop.permute.xlu0 %756
      %vm758 = vcmask 777216
      %v759 = vsel %vm758, %v753, %v755
      %v760 = vsel %vm758, %v755, %v757
      %vm763 = vcmask 1043456
      %v764 = vsel %vm763, %v642, %v725
      %v765 = vsel %vm763, %v643, %v726
      %v766 = vsel %vm763, %v661, %v731
      %v767 = vsel %vm763, %v662, %v732
      %v768 = vsel %vm763, %v742, %v748
      %v769 = vsel %vm763, %v743, %v749
      %v770 = vsel %vm763, %v700, %v759
      %v771 = vsel %vm763, %v701, %v760
      %v772 = vld [vmem:[%s4] sm:$0xf]
      %v773 = vpack.c.bf16 %v766, %v764
      %v774 = vpack.c.bf16 %v767, %v765
      %v775 = vpack.c.bf16 %v770, %v768
      %v776 = vpack.c.bf16 %v771, %v769
      %v777 = vpack.c.bf16 %v713, %v713
      %v778 = vpack.c.bf16 %v714, %v714
      %vm779 = vcmask 293888
      %v781 = vsel %vm779, %v772, 0
      %v784 = vsel %vm552, %v777, 0
      %v787 = vsel %vm552, %v778, 0
      %789 = vmatpush.bf16.msra.mxu0 0
      %790 = vmatpush.bf16.msra.mxu0 0
      %791 = vmatpush.bf16.msra.mxu0 0
      %792 = vmatpush.bf16.msra.mxu0 0
      %793 = vmatpush.bf16.msra.mxu0 0
      %794 = vmatpush.bf16.msra.mxu0 %v784
      %795 = vmatpush.bf16.msra.mxu0 %v775
      %796 = vmatpush.bf16.msra.mxu0 %v773
      %797 = vmatmul.bf16.gmra.mxu0 %v781
      %v798 = vpop.f32.mrf.mxu0
      %v799 = vadd.f32 0.0, %v798
      %v800 = vpop.f32.mrf.mxu0
      %801 = vdwg.mxu0
      %802 = vmatpush.bf16.msra.mxu0 0
      %803 = vmatpush.bf16.msra.mxu0 0
      %804 = vmatpush.bf16.msra.mxu0 0
      %805 = vmatpush.bf16.msra.mxu0 0
      %806 = vmatpush.bf16.msra.mxu0 0
      %807 = vmatpush.bf16.msra.mxu0 %v787
      %808 = vmatpush.bf16.msra.mxu0 %v776
      %809 = vmatpush.bf16.msra.mxu0 %v774
      %810 = vmatmul.bf16.gmra.mxu0 %v781
      %v811 = vpop.f32.mrf.mxu0
      %v812 = vadd.f32 0.0, %v811
      %v813 = vpop.f32.mrf.mxu0
      %814 = vdwg.mxu0
      %v815 = vld [vmem:[%s5] sm:$0xff]
      %817 = vset.pattern.permute.xlu0 0
      %818 = vperm.xlu0 %817, %v815
      %v819 = vpop.permute.xlu0 %818
      %v821 = vmul.f32 %v799, %v819
      %v822 = vmul.f32 %v812, %v819
      %v823 = vld [vmem:[%s6] sm:$0xff]
      %825 = vset.pattern.permute.xlu0 0
      %826 = vperm.xlu0 %825, %v823
      %v827 = vpop.permute.xlu0 %826
      %v829 = vadd.f32 %v821, %v827
      %v830 = vadd.f32 %v822, %v827
      %v831 = vmax.f32 %v829, 0.0
      %v832 = vmax.f32 %v830, 0.0
      %835 = vrot.lane.b32.xlu0 %v621, 17
      %v836 = vpop.permute.xlu0 %835
      %837 = vrot.lane.b32.xlu0 %v622, 17
      %v838 = vpop.permute.xlu0 %837
      %v839 = vsel %vm631, %v836, %v838
      %v843 = vsel %vm631, 0.0, %v836
      %v844 = vsel %vm631, %v838, 0.0
      %v845 = vsel %vm640, %v843, 0.0
      %v846 = vsel %vm641, %v839, 0.0
      %849 = vrot.lane.b32.xlu0 %v843, 126
      %v850 = vpop.permute.xlu0 %849
      %851 = vrot.lane.b32.xlu0 %v839, 126
      %v852 = vpop.permute.xlu0 %851
      %853 = vrot.lane.b32.xlu0 %v844, 126
      %v854 = vpop.permute.xlu0 %853
      %v855 = vsel %vm656, %v850, %v852
      %v856 = vsel %vm656, %v852, %v854
      %v859 = vsel %vm646, %v855, 0.0
      %v860 = vsel %vm647, %v856, 0.0
      %861 = vrot.lane.b32.xlu0 %v843, 112
      %v862 = vpop.permute.xlu0 %861
      %863 = vrot.lane.b32.xlu0 %v839, 112
      %v864 = vpop.permute.xlu0 %863
      %865 = vrot.lane.b32.xlu0 %v844, 112
      %v866 = vpop.permute.xlu0 %865
      %v867 = vsel %vm669, %v862, %v864
      %v868 = vsel %vm669, %v864, %v866
      %v871 = vsel %vm640, %v867, 0.0
      %v872 = vsel %vm641, %v868, 0.0
      %873 = vrot.lane.b32.xlu0 %v843, 110
      %v874 = vpop.permute.xlu0 %873
      %875 = vrot.lane.b32.xlu0 %v839, 110
      %v876 = vpop.permute.xlu0 %875
      %877 = vrot.lane.b32.xlu0 %v844, 110
      %v878 = vpop.permute.xlu0 %877
      %v879 = vsel %vm682, %v874, %v876
      %v880 = vsel %vm682, %v876, %v878
      %v883 = vsel %vm646, %v879, 0.0
      %v884 = vsel %vm647, %v880, 0.0
      %885 = vrot.lane.b32.xlu0 %v843, 96
      %v886 = vpop.permute.xlu0 %885
      %887 = vrot.lane.b32.xlu0 %v839, 96
      %v888 = vpop.permute.xlu0 %887
      %889 = vrot.lane.b32.xlu0 %v844, 96
      %v890 = vpop.permute.xlu0 %889
      %v891 = vsel %vm695, %v886, %v888
      %v892 = vsel %vm695, %v888, %v890
      %v895 = vsel %vm640, %v891, 0.0
      %v896 = vsel %vm641, %v892, 0.0
      %897 = vrot.lane.b32.xlu0 %v843, 94
      %v898 = vpop.permute.xlu0 %897
      %899 = vrot.lane.b32.xlu0 %v839, 94
      %v900 = vpop.permute.xlu0 %899
      %901 = vrot.lane.b32.xlu0 %v844, 94
      %v902 = vpop.permute.xlu0 %901
      %v903 = vsel %vm708, %v898, %v900
      %v904 = vsel %vm708, %v900, %v902
      %v907 = vsel %vm646, %v903, 0.0
      %v908 = vsel %vm647, %v904, 0.0
      %v909 = vrot.slane %v843, 4
      %v910 = vrot.slane %v839, 4
      %v911 = vrot.slane %v844, 4
      %912 = vrot.lane.b32.xlu0 %v909, 127
      %v913 = vpop.permute.xlu0 %912
      %914 = vrot.lane.b32.xlu0 %v910, 127
      %v915 = vpop.permute.xlu0 %914
      %916 = vrot.lane.b32.xlu0 %v911, 127
      %v917 = vpop.permute.xlu0 %916
      %v918 = vsel %vm724, %v913, %v915
      %v919 = vsel %vm724, %v915, %v917
      %v924 = vrot.slane %v871, 4
      %v925 = vrot.slane %v872, 4
      %928 = vrot.lane.b32.xlu0 %v843, 111
      %v929 = vpop.permute.xlu0 %928
      %930 = vrot.lane.b32.xlu0 %v839, 111
      %v931 = vpop.permute.xlu0 %930
      %932 = vrot.lane.b32.xlu0 %v844, 111
      %v933 = vpop.permute.xlu0 %932
      %v934 = vsel %vm741, %v929, %v931
      %v935 = vsel %vm741, %v931, %v933
      %v940 = vrot.slane %v883, 4
      %v941 = vrot.slane %v884, 4
      %944 = vrot.lane.b32.xlu0 %v909, 95
      %v945 = vpop.permute.xlu0 %944
      %946 = vrot.lane.b32.xlu0 %v910, 95
      %v947 = vpop.permute.xlu0 %946
      %948 = vrot.lane.b32.xlu0 %v911, 95
      %v949 = vpop.permute.xlu0 %948
      %v950 = vsel %vm758, %v945, %v947
      %v951 = vsel %vm758, %v947, %v949
      %v954 = vsel %vm763, %v845, %v918
      %v955 = vsel %vm763, %v846, %v919
      %v956 = vsel %vm763, %v859, %v924
      %v957 = vsel %vm763, %v860, %v925
      %v958 = vsel %vm763, %v934, %v940
      %v959 = vsel %vm763, %v935, %v941
      %v960 = vsel %vm763, %v895, %v950
      %v961 = vsel %vm763, %v896, %v951
      %v962 = vld [vmem:[%s7] sm:$0x3]
      %v963 = vpack.c.bf16 %v956, %v954
      %v964 = vpack.c.bf16 %v957, %v955
      %v965 = vpack.c.bf16 %v960, %v958
      %v966 = vpack.c.bf16 %v961, %v959
      %v967 = vpack.c.bf16 %v907, %v907
      %v968 = vpack.c.bf16 %v908, %v908
      %v970 = vsel %vm779, %v962, 0
      %v973 = vsel %vm552, %v967, 0
      %v976 = vsel %vm552, %v968, 0
      %978 = vmatpush.bf16.msra.mxu0 0
      %979 = vmatpush.bf16.msra.mxu0 0
      %980 = vmatpush.bf16.msra.mxu0 0
      %981 = vmatpush.bf16.msra.mxu0 0
      %982 = vmatpush.bf16.msra.mxu0 0
      %983 = vmatpush.bf16.msra.mxu0 %v973
      %984 = vmatpush.bf16.msra.mxu0 %v965
      %985 = vmatpush.bf16.msra.mxu0 %v963
      %986 = vmatmul.bf16.gmra.mxu0 %v970
      %v987 = vpop.f32.mrf.mxu0
      %v988 = vadd.f32 0.0, %v987
      %v989 = vpop.f32.mrf.mxu0
      %990 = vdwg.mxu0
      %991 = vmatpush.bf16.msra.mxu0 0
      %992 = vmatpush.bf16.msra.mxu0 0
      %993 = vmatpush.bf16.msra.mxu0 0
      %994 = vmatpush.bf16.msra.mxu0 0
      %995 = vmatpush.bf16.msra.mxu0 0
      %996 = vmatpush.bf16.msra.mxu0 %v976
      %997 = vmatpush.bf16.msra.mxu0 %v966
      %998 = vmatpush.bf16.msra.mxu0 %v964
      %999 = vmatmul.bf16.gmra.mxu0 %v970
      %v1000 = vpop.f32.mrf.mxu0
      %v1001 = vadd.f32 0.0, %v1000
      %v1002 = vpop.f32.mrf.mxu0
      %1003 = vdwg.mxu0
      %v1004 = vld [vmem:[%s8] sm:$0xf]
      %1006 = vset.pattern.permute.xlu0 0
      %1007 = vperm.xlu0 %1006, %v1004
      %v1008 = vpop.permute.xlu0 %1007
      %v1010 = vmul.f32 %v988, %v1008
      %v1011 = vmul.f32 %v1001, %v1008
      %v1012 = vld [vmem:[%s9] sm:$0xf]
      %1014 = vset.pattern.permute.xlu0 0
      %1015 = vperm.xlu0 %1014, %v1012
      %v1016 = vpop.permute.xlu0 %1015
      %v1018 = vadd.f32 %v1010, %v1016
      %v1019 = vadd.f32 %v1011, %v1016
      %v1020 = vmax.f32 %v1018, 0.0
      %v1021 = vmax.f32 %v1019, 0.0
      %1024 = vrot.lane.b32.xlu0 %v1020, 17
      %v1025 = vpop.permute.xlu0 %1024
      %1026 = vrot.lane.b32.xlu0 %v1021, 17
      %v1027 = vpop.permute.xlu0 %1026
      %v1028 = vsel %vm631, %v1025, %v1027
      %v1032 = vsel %vm631, 0.0, %v1025
      %v1033 = vsel %vm631, %v1027, 0.0
      %v1034 = vsel %vm640, %v1032, 0.0
      %v1035 = vsel %vm641, %v1028, 0.0
      %1038 = vrot.lane.b32.xlu0 %v1032, 126
      %v1039 = vpop.permute.xlu0 %1038
      %1040 = vrot.lane.b32.xlu0 %v1028, 126
      %v1041 = vpop.permute.xlu0 %1040
      %1042 = vrot.lane.b32.xlu0 %v1033, 126
      %v1043 = vpop.permute.xlu0 %1042
      %v1044 = vsel %vm656, %v1039, %v1041
      %v1045 = vsel %vm656, %v1041, %v1043
      %v1048 = vsel %vm646, %v1044, 0.0
      %v1049 = vsel %vm647, %v1045, 0.0
      %1050 = vrot.lane.b32.xlu0 %v1032, 112
      %v1051 = vpop.permute.xlu0 %1050
      %1052 = vrot.lane.b32.xlu0 %v1028, 112
      %v1053 = vpop.permute.xlu0 %1052
      %1054 = vrot.lane.b32.xlu0 %v1033, 112
      %v1055 = vpop.permute.xlu0 %1054
      %v1056 = vsel %vm669, %v1051, %v1053
      %v1057 = vsel %vm669, %v1053, %v1055
      %v1060 = vsel %vm640, %v1056, 0.0
      %v1061 = vsel %vm641, %v1057, 0.0
      %1062 = vrot.lane.b32.xlu0 %v1032, 110
      %v1063 = vpop.permute.xlu0 %1062
      %1064 = vrot.lane.b32.xlu0 %v1028, 110
      %v1065 = vpop.permute.xlu0 %1064
      %1066 = vrot.lane.b32.xlu0 %v1033, 110
      %v1067 = vpop.permute.xlu0 %1066
      %v1068 = vsel %vm682, %v1063, %v1065
      %v1069 = vsel %vm682, %v1065, %v1067
      %v1072 = vsel %vm646, %v1068, 0.0
      %v1073 = vsel %vm647, %v1069, 0.0
      %1074 = vrot.lane.b32.xlu0 %v1032, 96
      %v1075 = vpop.permute.xlu0 %1074
      %1076 = vrot.lane.b32.xlu0 %v1028, 96
      %v1077 = vpop.permute.xlu0 %1076
      %1078 = vrot.lane.b32.xlu0 %v1033, 96
      %v1079 = vpop.permute.xlu0 %1078
      %v1080 = vsel %vm695, %v1075, %v1077
      %v1081 = vsel %vm695, %v1077, %v1079
      %v1084 = vsel %vm640, %v1080, 0.0
      %v1085 = vsel %vm641, %v1081, 0.0
      %1086 = vrot.lane.b32.xlu0 %v1032, 94
      %v1087 = vpop.permute.xlu0 %1086
      %1088 = vrot.lane.b32.xlu0 %v1028, 94
      %v1089 = vpop.permute.xlu0 %1088
      %1090 = vrot.lane.b32.xlu0 %v1033, 94
      %v1091 = vpop.permute.xlu0 %1090
      %v1092 = vsel %vm708, %v1087, %v1089
      %v1093 = vsel %vm708, %v1089, %v1091
      %v1096 = vsel %vm646, %v1092, 0.0
      %v1097 = vsel %vm647, %v1093, 0.0
      %v1098 = vrot.slane %v1032, 4
      %v1099 = vrot.slane %v1028, 4
      %v1100 = vrot.slane %v1033, 4
      %1101 = vrot.lane.b32.xlu0 %v1098, 127
      %v1102 = vpop.permute.xlu0 %1101
      %1103 = vrot.lane.b32.xlu0 %v1099, 127
      %v1104 = vpop.permute.xlu0 %1103
      %1105 = vrot.lane.b32.xlu0 %v1100, 127
      %v1106 = vpop.permute.xlu0 %1105
      %v1107 = vsel %vm724, %v1102, %v1104
      %v1108 = vsel %vm724, %v1104, %v1106
      %v1113 = vrot.slane %v1060, 4
      %v1114 = vrot.slane %v1061, 4
      %1117 = vrot.lane.b32.xlu0 %v1032, 111
      %v1118 = vpop.permute.xlu0 %1117
      %1119 = vrot.lane.b32.xlu0 %v1028, 111
      %v1120 = vpop.permute.xlu0 %1119
      %1121 = vrot.lane.b32.xlu0 %v1033, 111
      %v1122 = vpop.permute.xlu0 %1121
      %v1123 = vsel %vm741, %v1118, %v1120
      %v1124 = vsel %vm741, %v1120, %v1122
      %v1129 = vrot.slane %v1072, 4
      %v1130 = vrot.slane %v1073, 4
      %1133 = vrot.lane.b32.xlu0 %v1098, 95
      %v1134 = vpop.permute.xlu0 %1133
      %1135 = vrot.lane.b32.xlu0 %v1099, 95
      %v1136 = vpop.permute.xlu0 %1135
      %1137 = vrot.lane.b32.xlu0 %v1100, 95
      %v1138 = vpop.permute.xlu0 %1137
      %v1139 = vsel %vm758, %v1134, %v1136
      %v1140 = vsel %vm758, %v1136, %v1138
      %v1143 = vsel %vm763, %v1034, %v1107
      %v1144 = vsel %vm763, %v1035, %v1108
      %v1145 = vsel %vm763, %v1048, %v1113
      %v1146 = vsel %vm763, %v1049, %v1114
      %v1147 = vsel %vm763, %v1123, %v1129
      %v1148 = vsel %vm763, %v1124, %v1130
      %v1149 = vsel %vm763, %v1084, %v1139
      %v1150 = vsel %vm763, %v1085, %v1140
      %v1151 = vld [vmem:[%s10] sm:$0x3]
      %v1152 = vpack.c.bf16 %v1145, %v1143
      %v1153 = vpack.c.bf16 %v1146, %v1144
      %v1154 = vpack.c.bf16 %v1149, %v1147
      %v1155 = vpack.c.bf16 %v1150, %v1148
      %v1156 = vpack.c.bf16 %v1096, %v1096
      %v1157 = vpack.c.bf16 %v1097, %v1097
      %v1159 = vsel %vm779, %v1151, 0
      %v1162 = vsel %vm552, %v1156, 0
      %v1165 = vsel %vm552, %v1157, 0
      %1167 = vmatpush.bf16.msra.mxu0 0
      %1168 = vmatpush.bf16.msra.mxu0 0
      %1169 = vmatpush.bf16.msra.mxu0 0
      %1170 = vmatpush.bf16.msra.mxu0 0
      %1171 = vmatpush.bf16.msra.mxu0 0
      %1172 = vmatpush.bf16.msra.mxu0 %v1162
      %1173 = vmatpush.bf16.msra.mxu0 %v1154
      %1174 = vmatpush.bf16.msra.mxu0 %v1152
      %1175 = vmatmul.bf16.gmra.mxu0 %v1159
      %v1176 = vpop.f32.mrf.mxu0
      %v1177 = vadd.f32 0.0, %v1176
      %v1178 = vpop.f32.mrf.mxu0
      %1179 = vdwg.mxu0
      %1180 = vmatpush.bf16.msra.mxu0 0
      %1181 = vmatpush.bf16.msra.mxu0 0
      %1182 = vmatpush.bf16.msra.mxu0 0
      %1183 = vmatpush.bf16.msra.mxu0 0
      %1184 = vmatpush.bf16.msra.mxu0 0
      %1185 = vmatpush.bf16.msra.mxu0 %v1165
      %1186 = vmatpush.bf16.msra.mxu0 %v1155
      %1187 = vmatpush.bf16.msra.mxu0 %v1153
      %1188 = vmatmul.bf16.gmra.mxu0 %v1159
      %v1189 = vpop.f32.mrf.mxu0
      %v1190 = vadd.f32 0.0, %v1189
      %v1191 = vpop.f32.mrf.mxu0
      %1192 = vdwg.mxu0
      %v1193 = vld [vmem:[%s11] sm:$0xf]
      %1195 = vset.pattern.permute.xlu0 0
      %1196 = vperm.xlu0 %1195, %v1193
      %v1197 = vpop.permute.xlu0 %1196
      %v1199 = vmul.f32 %v1177, %v1197
      %v1200 = vmul.f32 %v1190, %v1197
      %v1201 = vld [vmem:[%s12] sm:$0xf]
      %1203 = vset.pattern.permute.xlu0 0
      %1204 = vperm.xlu0 %1203, %v1201
      %v1205 = vpop.permute.xlu0 %1204
      %v1207 = vadd.f32 %v1199, %v1205
      %v1208 = vadd.f32 %v1200, %v1205
      %v1209 = vmax.f32 %v1207, 0.0
      %v1210 = vmax.f32 %v1208, 0.0
      %1211 = vst [vmem:[#allocation1] ss:$2 sm:$0xff] %v523
      %v1212 = vld.sshfl [vmem:[#allocation1] sm:$0xff pattern:$0x75316420]
      %v1213 = vld.sshfl [vmem:[#allocation1 + $0x8] sm:$0xff pattern:$0x75316420]
      %1214 = vrot.lane.b32.xlu0 %v1212, 1
      %v1215 = vpop.permute.xlu0 %1214
      %1216 = vrot.lane.b32.xlu0 %v1213, 1
      %v1217 = vpop.permute.xlu0 %1216
      %vm1218 = vcmask 7168
      %v1219 = vsel %vm1218, %v1215, %v1217
      %v1223 = vsel %vm1218, -inf, %v1215
      %v1224 = vsel %vm1218, %v1217, -inf
      %v1225 = vsel %vm640, %v1223, -inf
      %v1226 = vsel %vm641, %v1219, -inf
      %1229 = vrot.lane.b32.xlu0 %v1223, 126
      %v1230 = vpop.permute.xlu0 %1229
      %1231 = vrot.lane.b32.xlu0 %v1219, 126
      %v1232 = vpop.permute.xlu0 %1231
      %1233 = vrot.lane.b32.xlu0 %v1224, 126
      %v1234 = vpop.permute.xlu0 %1233
      %v1235 = vsel %vm656, %v1230, %v1232
      %v1236 = vsel %vm656, %v1232, %v1234
      %v1239 = vsel %vm646, %v1235, -inf
      %v1240 = vsel %vm647, %v1236, -inf
      %1241 = vst [vmem:[#allocation1] ss:$2 sm:$0xff] %v523
      %v1242 = vld.sshfl [vmem:[#allocation1] sm:$0xff pattern:$0x75316420]
      %v1243 = vld.sshfl [vmem:[#allocation1 + $0x8] sm:$0xff pattern:$0x75316420]
      %v1246 = vmax.f32 %v1225, %v1242
      %v1247 = vmax.f32 %v1226, %v1243
      %v1248 = vmax.f32 %v1246, %v1239
      %v1249 = vmax.f32 %v1247, %v1240
      %1252 = vrot.lane.b32.xlu0 %v1248, 16
      %v1253 = vpop.permute.xlu0 %1252
      %1254 = vrot.lane.b32.xlu0 %v1249, 16
      %v1255 = vpop.permute.xlu0 %1254
      %vm1256 = vcmask 130048
      %v1257 = vsel %vm1256, %v1253, %v1255
      %v1261 = vsel %vm1256, -inf, %v1253
      %v1262 = vsel %vm1256, %v1255, -inf
      %1265 = vrot.lane.b32.xlu0 %v1261, 112
      %v1266 = vpop.permute.xlu0 %1265
      %1267 = vrot.lane.b32.xlu0 %v1257, 112
      %v1268 = vpop.permute.xlu0 %1267
      %1269 = vrot.lane.b32.xlu0 %v1262, 112
      %v1270 = vpop.permute.xlu0 %1269
      %v1271 = vsel %vm669, %v1266, %v1268
      %v1272 = vsel %vm669, %v1268, %v1270
      %v1275 = vmax.f32 %v1261, %v1271
      %v1276 = vmax.f32 %v1257, %v1272
      %1277 = vrot.lane.b32.xlu0 %v1261, 96
      %v1278 = vpop.permute.xlu0 %1277
      %1279 = vrot.lane.b32.xlu0 %v1257, 96
      %v1280 = vpop.permute.xlu0 %1279
      %1281 = vrot.lane.b32.xlu0 %v1262, 96
      %v1282 = vpop.permute.xlu0 %1281
      %v1283 = vsel %vm695, %v1278, %v1280
      %v1284 = vsel %vm695, %v1280, %v1282
      %v1287 = vmax.f32 %v1275, %v1283
      %v1288 = vmax.f32 %v1276, %v1284
      %v1289 = vld [vmem:[%s13] sm:$0x3]
      %v1290 = vpack.c.bf16 %v1287, %v1287
      %v1291 = vpack.c.bf16 %v1288, %v1288
      %v1293 = vsel %vm548, %v1289, 0
      %v1296 = vsel %vm552, %v1290, 0
      %v1299 = vsel %vm552, %v1291, 0
      %1301 = vmatpush.bf16.msra.mxu0 0
      %1302 = vmatpush.bf16.msra.mxu0 0
      %1303 = vmatpush.bf16.msra.mxu0 0
      %1304 = vmatpush.bf16.msra.mxu0 0
      %1305 = vmatpush.bf16.msra.mxu0 0
      %1306 = vmatpush.bf16.msra.mxu0 0
      %1307 = vmatpush.bf16.msra.mxu0 0
      %1308 = vmatpush.bf16.msra.mxu0 %v1296
      %1309 = vmatmul.bf16.gmra.mxu0 %v1293
      %v1310 = vpop.f32.mrf.mxu0
      %v1311 = vadd.f32 0.0, %v1310
      %v1312 = vpop.f32.mrf.mxu0
      %1313 = vdwg.mxu0
      %1314 = vmatpush.bf16.msra.mxu0 0
      %1315 = vmatpush.bf16.msra.mxu0 0
      %1316 = vmatpush.bf16.msra.mxu0 0
      %1317 = vmatpush.bf16.msra.mxu0 0
      %1318 = vmatpush.bf16.msra.mxu0 0
      %1319 = vmatpush.bf16.msra.mxu0 0
      %1320 = vmatpush.bf16.msra.mxu0 0
      %1321 = vmatpush.bf16.msra.mxu0 %v1299
      %1322 = vmatmul.bf16.gmra.mxu0 %v1293
      %v1323 = vpop.f32.mrf.mxu0
      %v1324 = vadd.f32 0.0, %v1323
      %v1325 = vpop.f32.mrf.mxu0
      %1326 = vdwg.mxu0
      %v1327 = vld [vmem:[%s14] sm:$0xf]
      %1329 = vset.pattern.permute.xlu0 0
      %1330 = vperm.xlu0 %1329, %v1327
      %v1331 = vpop.permute.xlu0 %1330
      %v1333 = vmul.f32 %v1311, %v1331
      %v1334 = vmul.f32 %v1324, %v1331
      %v1335 = vld [vmem:[%s15] sm:$0xf]
      %1337 = vset.pattern.permute.xlu0 0
      %1338 = vperm.xlu0 %1337, %v1335
      %v1339 = vpop.permute.xlu0 %1338
      %v1341 = vadd.f32 %v1333, %v1339
      %v1342 = vadd.f32 %v1334, %v1339
      %v1343 = vmax.f32 %v1341, 0.0
      %v1344 = vmax.f32 %v1342, 0.0
      %v1347 = vrot.slane %v831, 4
      %v1348 = vrot.slane %v832, 4
      %v1353 = vrot.slane %v1209, 4
      %v1354 = vrot.slane %v1210, 4
      %v1357 = vsel %vm763, %v619, %v1347
      %v1358 = vsel %vm763, %v620, %v1348
      %v1359 = vsel %vm763, %v1347, %v1353
      %v1360 = vsel %vm763, %v1348, %v1354
      %1361 = vst [vmem:[%s521] sm:$0xff] %v1357
      %1362 = vst [vmem:[%s521 + $0x8] sm:$0xff] %v1358
      %1363 = vst [vmem:[%s521 + $0x10] sm:$0xff] %v1359
      %1364 = vst [vmem:[%s521 + $0x18] sm:$0xff] %v1360
      %1365 = vst [vmem:[%s521 + $0x20] sm:$0xf] %v1343
      %1366 = vst [vmem:[%s521 + $0x28] sm:$0xf] %v1344
      %p1367 = scmp.lt.s32.totalorder %s27, 1
      %s1368 = scalar_select %p1367, %s27, 1
      %s1369 = smul.addr %s1368, 6
      %s1370 = smul.addr %s1369, 8
      %s1371 = scalar_lea.vmem %s16, %s1370
      // Predicated region
      $region85: #{inception_block.1} parent=83 // pred_check
        %p1372 = pneg %p386
      $region86: #{inception_block.1} parent=83 // pred_check_branch
        %1374 = sbr.rel (%p1372) target = $region88
      $region87: #{inception_block.1} parent=83 // pred_region
        _
      $region88: #{inception_block.1} parent=83 // pred_fallthru
        _
    $region84: #{inception_block.1} parent=5 // pred_fallthru
      _
    %p1375 = scmp.le.s32.totalorder 2, %s22
    // Predicated region
    $region89: #{inception_block.1} parent=5 // pred_check
      %p1376 = pneg %p1375
    $region90: #{inception_block.1} parent=5 // pred_check_branch
      %1378 = sbr.rel (%p1376) target = $region92
    $region91: #{inception_block.1} parent=5 // pred_region
      %s1379 = ssub.s32 %s22, 2
      // Predicated region
      $region93: #{inception_block.1} parent=91 // pred_check
        %p1380 = pneg %p392
      $region94: #{inception_block.1} parent=91 // pred_check_branch
        %1382 = sbr.rel (%p1380) target = $region96
      $region95: #{inception_block.1} parent=91 // pred_region
        %p1383 = scmp.lt.s32.totalorder %s28, 1
        %s1384 = scalar_select %p1383, %s28, 1
        %s1385 = smul.addr %s1384, 6
        %s1386 = smul.addr %s1385, 8
        %s1387 = scalar_lea.vmem %s16, %s1386
      $region96: #{inception_block.1} parent=91 // pred_fallthru
        _
    $region92: #{inception_block.1} parent=5 // pred_fallthru
      _
  $region6: #{inception_block.1} parent=0 // loop_footer
    %s26 = sadd.s32 1, %s22
  $region7: #{inception_block.1} parent=0 // loop_footer_branch
    %21 = sbr.rel target = $region3
  $region8: #{inception_block.1} parent=0 // loop_exit
    _

</llo_original>
